<compile_context>
chip_gen: v7x
topology: tpu7x:2x2x1
jax: 0.10.0
libtpu: 0.0.40
codegen_flags: <defaults>
</compile_context>

<pallas_src>
import functools

import jax
import jax.numpy as jnp
from jax.experimental import pallas as pl
from jax.experimental.pallas import tpu as pltpu


def _round_up(x, m):
    return (x + m - 1) // m * m


def _vmem_budget_bytes():
    """Per-pallas_call VMEM budget (also used as vmem_limit_bytes) per generation."""
    cap = 128 * 1024 * 1024
    try:
        cap = int(getattr(pltpu.get_tpu_info(), "vmem_capacity_bytes", cap))
    except Exception:
        pass
    # Half the physical VMEM, capped: 64 MiB on v5e/v6e (128 MiB phys), 32 MiB on v7x.
    return min(cap // 2, 64 * 1024 * 1024)


def _choose_edge_tile(num_edges, n_pad, f_max, budget):
    """Largest multiple-of-128 edge tile that fits the VMEM budget."""
    # Resident blocks (Pallas double-buffers even constant-index-map blocks).
    resident = 2 * (4 * f_max * n_pad + 2 * f_max * n_pad)      # f32 h + bf16 Wh
    # Per edge column: double-buffered bf16 streams (m in, y, m_out) + i32 indices,
    # plus in-kernel temps (bf16 one-hot + its i32 iota, f32 y tile).
    per_col = 2 * (3 * 2 * f_max + 4) + 6 * n_pad + 4 * f_max
    avail = budget - resident - (4 << 20)                       # headroom for Mosaic
    if avail < 128 * per_col:
        # TODO(synk): add node-dimension blocking so very large graphs fit 64 MiB VMEM.
        raise NotImplementedError(
            "num_nodes too large for the un-blocked node dimension in these kernels")
    te = min(avail // per_col, 2048, _round_up(max(num_edges, 1), 128))
    return max(128, int(te) // 128 * 128)


# ---------------------------------------------------------------------------
# Pass A: h[:, n] = sum over edges e with dst(e) == n of m[:, e]  (scatter-sum)
# ---------------------------------------------------------------------------
def _aggregate_kernel(dst_ref, m_ref, h_ref):
    i = pl.program_id(0)

    @pl.when(i == 0)
    def _init():
        h_ref[...] = jnp.zeros_like(h_ref)

    n = h_ref.shape[1]
    te = m_ref.shape[1]
    dst = dst_ref[...]                                             # (1, TE) int32
    node_ids = jax.lax.broadcasted_iota(jnp.int32, (n, te), 0)
    oh_t = (node_ids == dst).astype(jnp.bfloat16)                  # (N, TE); pad edges -> 0
    # h[f, v] += sum_e m[f, e] * oh_t[v, e]   (bf16 x bf16 -> f32 accumulate on MXU)
    h_ref[...] += jax.lax.dot_general(
        m_ref[...], oh_t, (((1,), (1,)), ((), ())),
        preferred_element_type=jnp.float32)


def _aggregate(dst_row, m_t, n_pad, te, vmem_limit):
    fin, e_pad = m_t.shape
    return pl.pallas_call(
        _aggregate_kernel,
        grid=(e_pad // te,),
        in_specs=[
            pl.BlockSpec((1, te), lambda i: (0, i)),               # dst indices
            pl.BlockSpec((fin, te), lambda i: (0, i)),             # edge feats (F, E) bf16
        ],
        out_specs=pl.BlockSpec((fin, n_pad), lambda i: (0, 0)),    # resident accumulator
        out_shape=jax.ShapeDtypeStruct((fin, n_pad), jnp.float32),
        compiler_params=pltpu.CompilerParams(
            dimension_semantics=("arbitrary",),
            vmem_limit_bytes=vmem_limit),
    )(dst_row, m_t)


# ---------------------------------------------------------------------------
# Pass B: y = Wh[:, src(e)] + W2 @ m + b   (W1 hoisted through the gather),
#         masked BatchNorm statistics (mask only on the last partial tile),
#         finalize (gamma, beta, mean, var) -> single (scale, shift) FMA.
# ---------------------------------------------------------------------------
def _edge_linear_stats_kernel(src_ref, m_ref, wh_ref, w2_ref, b_ref,
                              gamma_ref, beta_ref,
                              y_ref, scale_ref, shift_ref,
                              sum_sc, sq_sc, *, num_edges, eps):
    i = pl.program_id(0)
    n = wh_ref.shape[1]
    te = m_ref.shape[1]

    @pl.when(i == 0)
    def _init():
        sum_sc[...] = jnp.zeros_like(sum_sc)
        sq_sc[...] = jnp.zeros_like(sq_sc)

    # gather+linear: y[:, e] = Wh[:, src(e)] + W2 @ m[:, e] + b  via one-hot matmul
    src = src_ref[...]                                             # (1, TE)
    node_ids = jax.lax.broadcasted_iota(jnp.int32, (n, te), 0)
    oh_t = (node_ids == src).astype(jnp.bfloat16)                  # (N, TE)
    y = (jnp.dot(wh_ref[...], oh_t, preferred_element_type=jnp.float32)
         + jnp.dot(w2_ref[...], m_ref[...], preferred_element_type=jnp.float32)
         + b_ref[...])                                             # (Fout, TE) f32
    y_ref[...] = y.astype(y_ref.dtype)

    # batch statistics; padded edge columns only exist in the last (partial) tile
    rem = num_edges % te                                           # static python int
    if rem == 0:
        sum_sc[...] += jnp.sum(y, axis=1, keepdims=True)
        sq_sc[...] += jnp.sum(y * y, axis=1, keepdims=True)
    else:
        last = pl.num_programs(0) - 1

        @pl.when(i != last)
        def _full_tile():
            sum_sc[...] += jnp.sum(y, axis=1, keepdims=True)
            sq_sc[...] += jnp.sum(y * y, axis=1, keepdims=True)

        @pl.when(i == last)
        def _partial_tile():
            col = jax.lax.broadcasted_iota(jnp.int32, (1, te), 1)
            valid = (col < rem).astype(jnp.float32)
            sum_sc[...] += jnp.sum(y * valid, axis=1, keepdims=True)
            sq_sc[...] += jnp.sum(y * y * valid, axis=1, keepdims=True)

    # finalize BatchNorm: biased variance, fold affine into one scale/shift FMA
    @pl.when(i == pl.num_programs(0) - 1)
    def _finalize():
        inv_e = 1.0 / float(num_edges)
        mean = sum_sc[...] * inv_e
        var = jnp.maximum(sq_sc[...] * inv_e - mean * mean, 0.0)
        scale = gamma_ref[...] * jax.lax.rsqrt(var + eps)
        scale_ref[...] = scale
        shift_ref[...] = beta_ref[...] - mean * scale


def _edge_linear_stats(src_row, m_t, wh_t, w2_t, b_c, gamma_c, beta_c,
                       num_edges, te, vmem_limit, eps=1e-5):
    fin, e_pad = m_t.shape
    fout, n_pad = wh_t.shape
    const = lambda shape: pl.BlockSpec(shape, lambda i: (0,) * len(shape))
    return pl.pallas_call(
        functools.partial(_edge_linear_stats_kernel, num_edges=num_edges, eps=eps),
        grid=(e_pad // te,),
        in_specs=[
            pl.BlockSpec((1, te), lambda i: (0, i)),               # src indices
            pl.BlockSpec((fin, te), lambda i: (0, i)),             # m (F, E) bf16
            const((fout, n_pad)),                                  # Wh = W1 @ h (resident, bf16)
            const((fout, fin)),                                    # W2 (acts on m) bf16
            const((fout, 1)),                                      # bias
            const((fout, 1)),                                      # BN gamma
            const((fout, 1)),                                      # BN beta
        ],
        out_specs=[
            pl.BlockSpec((fout, te), lambda i: (0, i)),            # pre-BN activations y
            const((fout, 1)),                                      # BN scale
            const((fout, 1)),                                      # BN shift
        ],
        out_shape=(jax.ShapeDtypeStruct((fout, e_pad), jnp.bfloat16),
                   jax.ShapeDtypeStruct((fout, 1), jnp.float32),
                   jax.ShapeDtypeStruct((fout, 1), jnp.float32)),
        scratch_shapes=[pltpu.VMEM((fout, 1), jnp.float32),        # sum(y)
                        pltpu.VMEM((fout, 1), jnp.float32)],       # sum(y*y)
        compiler_params=pltpu.CompilerParams(
            dimension_semantics=("arbitrary",),
            vmem_limit_bytes=vmem_limit),
    )(src_row, m_t, wh_t, w2_t, b_c, gamma_c, beta_c)


# ---------------------------------------------------------------------------
# Pass C+A (fused): apply BatchNorm (folded) + ReLU, and scatter-sum the new
# edge features into the next layer's node accumulator h.
# ---------------------------------------------------------------------------
def _bn_relu_aggregate_kernel(dst_ref, y_ref, scale_ref, shift_ref,
                              m_out_ref, h_ref):
    i = pl.program_id(0)

    @pl.when(i == 0)
    def _init():
        h_ref[...] = jnp.zeros_like(h_ref)

    m_new = jnp.maximum(
        y_ref[...].astype(jnp.float32) * scale_ref[...] + shift_ref[...], 0.0)
    m_new_bf16 = m_new.astype(jnp.bfloat16)                        # (Fout, TE)
    m_out_ref[...] = m_new_bf16

    n = h_ref.shape[1]
    te = y_ref.shape[1]
    dst = dst_ref[...]
    node_ids = jax.lax.broadcasted_iota(jnp.int32, (n, te), 0)
    oh_t = (node_ids == dst).astype(jnp.bfloat16)                  # (N, TE)
    h_ref[...] += jax.lax.dot_general(
        m_new_bf16, oh_t, (((1,), (1,)), ((), ())),
        preferred_element_type=jnp.float32)


def _bn_relu_aggregate(dst_row, y_t, scale, shift, n_pad, te, vmem_limit):
    fout, e_pad = y_t.shape
    const = lambda shape: pl.BlockSpec(shape, lambda i: (0,) * len(shape))
    return pl.pallas_call(
        _bn_relu_aggregate_kernel,
        grid=(e_pad // te,),
        in_specs=[
            pl.BlockSpec((1, te), lambda i: (0, i)),               # dst indices
            pl.BlockSpec((fout, te), lambda i: (0, i)),            # pre-BN y (bf16)
            const((fout, 1)),                                      # BN scale
            const((fout, 1)),                                      # BN shift
        ],
        out_specs=[
            pl.BlockSpec((fout, te), lambda i: (0, i)),            # new edge feats (bf16)
            const((fout, n_pad)),                                  # next-layer h accumulator
        ],
        out_shape=(jax.ShapeDtypeStruct((fout, e_pad), jnp.bfloat16),
                   jax.ShapeDtypeStruct((fout, n_pad), jnp.float32)),
        compiler_params=pltpu.CompilerParams(
            dimension_semantics=("arbitrary",),
            vmem_limit_bytes=vmem_limit),
    )(dst_row, y_t, scale, shift)


# ---------------------------------------------------------------------------
# Encoder wrapper
# ---------------------------------------------------------------------------
def init_params(key, layers_dimensions):
    """torch.nn.Linear-style init (uniform +-1/sqrt(fan_in)); BN gamma=1, beta=0."""
    params = []
    for i in range(len(layers_dimensions) - 1):
        in_dim = 2 * layers_dimensions[i]
        out_dim = layers_dimensions[i + 1]
        key, kw, kb = jax.random.split(key, 3)
        bound = 1.0 / float(in_dim) ** 0.5
        w = jax.random.uniform(kw, (in_dim, out_dim), jnp.float32, -bound, bound)
        b = jax.random.uniform(kb, (1, out_dim), jnp.float32, -bound, bound)
        gamma = jnp.ones((1, out_dim), jnp.float32)
        beta = jnp.zeros((1, out_dim), jnp.float32)
        params.append((w, b, gamma, beta))
    return params


def simple_edge_encoder(edge_feats, src, dst, num_nodes, params):
    """Full Simple_edge_encoder forward: returns feat_nodes of the last layer."""
    num_edges, fin0 = edge_feats.shape
    dims = [fin0] + [w.shape[1] for (w, _, _, _) in params]
    f_pads = [_round_up(d, 16) for d in dims]                      # bf16 sublane packing
    n_pad = _round_up(max(num_nodes, 1), 128)                      # lane-dense resident h

    budget = _vmem_budget_bytes()
    te = _choose_edge_tile(num_edges, n_pad, max(f_pads), budget)
    e_pad = _round_up(max(num_edges, 1), te)
    pad_e = e_pad - num_edges

    # Padded edges use node index == n_pad, which matches no row of the in-kernel
    # iota -> all-zero one-hot column -> no contribution to h and a zero gather;
    # BatchNorm statistics mask them out on the last (partial) tile.
    src_row = jnp.pad(src.astype(jnp.int32), (0, pad_e),
                      constant_values=n_pad).reshape(1, e_pad)
    dst_row = jnp.pad(dst.astype(jnp.int32), (0, pad_e),
                      constant_values=n_pad).reshape(1, e_pad)
    m_t = jnp.pad(edge_feats.astype(jnp.float32).T,
                  ((0, f_pads[0] - fin0), (0, pad_e))).astype(jnp.bfloat16)

    h_t = _aggregate(dst_row, m_t, n_pad, te, budget)              # h of layer 0, (F0p, Np) f32

    # All layers except the last need the edge-apply (Linear+BN+ReLU) and the scatter
    # of the new edge features into the next layer's h; the last layer's edge output
    # is never used by the encoder, so that pass is skipped entirely.
    for li, (w, b, gamma, beta) in enumerate(params[:-1]):
        fin, fout = dims[li], dims[li + 1]
        fin_p, fout_p = f_pads[li], f_pads[li + 1]
        # zero-padded weights/affine params: padded rows of y stay exactly 0 and
        # gamma_pad == 0 keeps them 0 through BN+ReLU.
        w1 = jnp.zeros((fout_p, fin_p), jnp.float32).at[:fout, :fin].set(w[:fin, :].T)
        w2 = jnp.zeros((fout_p, fin_p), jnp.float32).at[:fout, :fin].set(w[fin:, :].T)
        b_c = jnp.zeros((fout_p, 1), jnp.float32).at[:fout, 0].set(b.reshape(-1))
        gamma_c = jnp.zeros((fout_p, 1), jnp.float32).at[:fout, 0].set(gamma.reshape(-1))
        beta_c = jnp.zeros((fout_p, 1), jnp.float32).at[:fout, 0].set(beta.reshape(-1))

        # Hoist the gather-side Linear through the gather: Wh = W1 @ h (tiny matmul).
        wh_t = jnp.dot(w1, h_t, preferred_element_type=jnp.float32).astype(jnp.bfloat16)

        y_t, scale, shift = _edge_linear_stats(
            src_row, m_t, wh_t, w2.astype(jnp.bfloat16),
            b_c, gamma_c, beta_c, num_edges, te, budget)
        # BN apply + ReLU, fused with the next layer's scatter-sum.
        m_t, h_t = _bn_relu_aggregate(dst_row, y_t, scale, shift, n_pad, te, budget)

    out_dim = dims[-2]                                             # layers_dimensions[-2]
    return h_t[:out_dim, :num_nodes].T                             # (N, out_dim) f32


def _reference_forward(edge_feats, src, dst, num_nodes, params):
    """Pure-JAX f32 reference with identical semantics (correctness check)."""
    m = edge_feats
    feat_nodes = None
    for (w, b, gamma, beta) in params:
        h = jnp.zeros((num_nodes, m.shape[1]), jnp.float32).at[dst].add(m)
        feat_nodes = h
        y = jnp.concatenate([h[src], m], axis=1) @ w + b
        mean = jnp.mean(y, axis=0, keepdims=True)
        var = jnp.mean((y - mean) ** 2, axis=0, keepdims=True)
        y = (y - mean) * jax.lax.rsqrt(var + 1e-5) * gamma + beta
        m = jnp.maximum(y, 0.0)                                    # activation = ReLU
    return feat_nodes


if __name__ == "__main__":
    key = jax.random.PRNGKey(0)

    # small synthetic graph: N nodes, E edges, feature dims [4, 8, 8]
    layers_dimensions = [4, 8, 8]
    N, E = 8, 16

    key, k_src, k_dst, k_feat, k_par = jax.random.split(key, 5)
    src = jax.random.randint(k_src, (E,), 0, N, dtype=jnp.int32)
    dst = jax.random.randint(k_dst, (E,), 0, N, dtype=jnp.int32)
    edge_feats = jax.random.normal(k_feat, (E, layers_dimensions[0]), jnp.float32)
    params = init_params(k_par, layers_dimensions)

    fwd = jax.jit(functools.partial(simple_edge_encoder,
                                    num_nodes=N, params=params))
    feat_nodes = fwd(edge_feats, src, dst)
    jax.block_until_ready(feat_nodes)

    assert feat_nodes.shape == (N, layers_dimensions[-2]), feat_nodes.shape

    ref = _reference_forward(edge_feats, src, dst, N, params)
    # bf16 MXU operands (f32 accumulation) vs pure-f32 reference: compare with a
    # relative Frobenius-norm tolerance instead of tight element-wise allclose.
    rel_err = float(jnp.linalg.norm(feat_nodes - ref)
                    / (jnp.linalg.norm(ref) + 1e-12))
    assert rel_err < 3e-2, rel_err

    print("KERNEL_OK")
</pallas_src>

<mosaic_0001>
module attributes {stable_mosaic.version = 11 : i64} {
  func.func @_aggregate_kernel(%arg0: i32, %arg1: memref<1x128xi32, #tpu.memory_space<vmem>>, %arg2: memref<16x128xbf16, #tpu.memory_space<vmem>>, %arg3: memref<16x128xf32, #tpu.memory_space<vmem>>) attributes {dimension_semantics = [#tpu.dimension_semantics<arbitrary>], iteration_bounds = array<i64: 1>, scalar_prefetch = 0 : i64, scratch_operands = 0 : i64, tpu.core_type = #tpu.core_type<tc>, window_params = [{transform_indices = @transform_0, window_bounds = array<i64: 1, 128>}, {transform_indices = @transform_1, window_bounds = array<i64: 16, 128>}, {pipeline_mode = #tpu.pipeline_mode<synchronous>, transform_indices = @transform_2, window_bounds = array<i64: 16, 128>}]} {
    %c0_i32 = arith.constant 0 : i32
    %0 = arith.cmpi eq, %arg0, %c0_i32 : i32
    %1 = arith.extui %0 : i1 to i32
    %c0_i32_0 = arith.constant 0 : i32
    %2 = arith.cmpi ne, %1, %c0_i32_0 : i32
    scf.if %2 {
      %cst_8 = arith.constant 0.000000e+00 : f32
      %15 = vector.broadcast %cst_8 : f32 to vector<16x128xf32>
      %c0_9 = arith.constant 0 : index
      %c0_10 = arith.constant 0 : index
      %16 = vector.load %arg3[%c0_9, %c0_10] : memref<16x128xf32, #tpu.memory_space<vmem>>, vector<16x128xf32>
      tpu.vector_store %arg3[%c0_9, %c0_10], %15 {strides = array<i32>} : memref<16x128xf32, #tpu.memory_space<vmem>>, vector<16x128xf32>,
    } else {
    }
    %c0 = arith.constant 0 : index
    %c0_1 = arith.constant 0 : index
    %3 = vector.load %arg1[%c0, %c0_1] : memref<1x128xi32, #tpu.memory_space<vmem>>, vector<1x128xi32>
    %4 = tpu.iota {dimensions = array<i32: 0>} : vector<128x128xi32>
    %5 = vector.broadcast %3 : vector<1x128xi32> to vector<128x128xi32>
    %6 = arith.cmpi eq, %4, %5 : vector<128x128xi32>
    %7 = arith.extui %6 : vector<128x128xi1> to vector<128x128xi32>
    %8 = arith.sitofp %7 : vector<128x128xi32> to vector<128x128xf32>
    %9 = arith.truncf %8 : vector<128x128xf32> to vector<128x128xbf16>
    %c0_2 = arith.constant 0 : index
    %c0_3 = arith.constant 0 : index
    %10 = vector.load %arg3[%c0_2, %c0_3] : memref<16x128xf32, #tpu.memory_space<vmem>>, vector<16x128xf32>
    %c0_4 = arith.constant 0 : index
    %c0_5 = arith.constant 0 : index
    %11 = vector.load %arg2[%c0_4, %c0_5] : memref<16x128xbf16, #tpu.memory_space<vmem>>, vector<16x128xbf16>
    %cst = arith.constant dense<0.000000e+00> : vector<16x128xf32>
    %12 = tpu.matmul %11, %9, %cst {dimension_numbers = #tpu.dot_dimension_numbers<[1], [1], [0], [0], [0, 0, 1, 0], [], []>} : vector<16x128xbf16>, vector<128x128xbf16>, vector<16x128xf32> -> vector<16x128xf32>
    %13 = arith.addf %10, %12 : vector<16x128xf32>
    %c0_6 = arith.constant 0 : index
    %c0_7 = arith.constant 0 : index
    %14 = vector.load %arg3[%c0_6, %c0_7] : memref<16x128xf32, #tpu.memory_space<vmem>>, vector<16x128xf32>
    tpu.vector_store %arg3[%c0_6, %c0_7], %13 {strides = array<i32>} : memref<16x128xf32, #tpu.memory_space<vmem>>, vector<16x128xf32>,
    return
  }
  func.func @transform_0(%arg0: i32) -> (i32, i32) {
    %c0_i32 = arith.constant 0 : i32
    %c0_i32_0 = arith.constant 0 : i32
    return %c0_i32, %arg0 : i32, i32
  }
  func.func @transform_1(%arg0: i32) -> (i32, i32) {
    %c0_i32 = arith.constant 0 : i32
    %c0_i32_0 = arith.constant 0 : i32
    return %c0_i32, %arg0 : i32, i32
  }
  func.func @transform_2(%arg0: i32) -> (i32, i32) {
    %c0_i32 = arith.constant 0 : i32
    %c0_i32_0 = arith.constant 0 : i32
    %c0_i32_1 = arith.constant 0 : i32
    return %c0_i32, %c0_i32_0 : i32, i32
  }
}

module attributes {stable_mosaic.version = 11 : i64} {
  func.func @_bn_relu_aggregate_kernel(%arg0: i32, %arg1: memref<1x128xi32, #tpu.memory_space<vmem>>, %arg2: memref<16x128xbf16, #tpu.memory_space<vmem>>, %arg3: memref<16x1xf32, #tpu.memory_space<vmem>>, %arg4: memref<16x1xf32, #tpu.memory_space<vmem>>, %arg5: memref<16x128xbf16, #tpu.memory_space<vmem>>, %arg6: memref<16x128xf32, #tpu.memory_space<vmem>>) attributes {dimension_semantics = [#tpu.dimension_semantics<arbitrary>], iteration_bounds = array<i64: 1>, scalar_prefetch = 0 : i64, scratch_operands = 0 : i64, tpu.core_type = #tpu.core_type<tc>, window_params = [{transform_indices = @transform_0, window_bounds = array<i64: 1, 128>}, {transform_indices = @transform_1, window_bounds = array<i64: 16, 128>}, {pipeline_mode = #tpu.pipeline_mode<synchronous>, transform_indices = @transform_2, window_bounds = array<i64: 16, 1>}, {pipeline_mode = #tpu.pipeline_mode<synchronous>, transform_indices = @transform_3, window_bounds = array<i64: 16, 1>}, {transform_indices = @transform_4, window_bounds = array<i64: 16, 128>}, {pipeline_mode = #tpu.pipeline_mode<synchronous>, transform_indices = @transform_5, window_bounds = array<i64: 16, 128>}]} {
    %c0_i32 = arith.constant 0 : i32
    %0 = arith.cmpi eq, %arg0, %c0_i32 : i32
    %1 = arith.extui %0 : i1 to i32
    %c0_i32_0 = arith.constant 0 : i32
    %2 = arith.cmpi ne, %1, %c0_i32_0 : i32
    scf.if %2 {
      %cst_15 = arith.constant 0.000000e+00 : f32
      %26 = vector.broadcast %cst_15 : f32 to vector<16x128xf32>
      %c0_16 = arith.constant 0 : index
      %c0_17 = arith.constant 0 : index
      %27 = vector.load %arg6[%c0_16, %c0_17] : memref<16x128xf32, #tpu.memory_space<vmem>>, vector<16x128xf32>
      tpu.vector_store %arg6[%c0_16, %c0_17], %26 {strides = array<i32>} : memref<16x128xf32, #tpu.memory_space<vmem>>, vector<16x128xf32>,
    } else {
    }
    %c0 = arith.constant 0 : index
    %c0_1 = arith.constant 0 : index
    %3 = vector.load %arg2[%c0, %c0_1] : memref<16x128xbf16, #tpu.memory_space<vmem>>, vector<16x128xbf16>
    %4 = arith.extf %3 : vector<16x128xbf16> to vector<16x128xf32>
    %c0_2 = arith.constant 0 : index
    %c0_3 = arith.constant 0 : index
    %5 = vector.load %arg3[%c0_2, %c0_3] : memref<16x1xf32, #tpu.memory_space<vmem>>, vector<16x1xf32>
    %6 = vector.broadcast %5 : vector<16x1xf32> to vector<16x128xf32>
    %7 = arith.mulf %4, %6 : vector<16x128xf32>
    %c0_4 = arith.constant 0 : index
    %c0_5 = arith.constant 0 : index
    %8 = vector.load %arg4[%c0_4, %c0_5] : memref<16x1xf32, #tpu.memory_space<vmem>>, vector<16x1xf32>
    %9 = vector.broadcast %8 : vector<16x1xf32> to vector<16x128xf32>
    %10 = arith.addf %7, %9 : vector<16x128xf32>
    %cst = arith.constant 0.000000e+00 : f32
    %11 = vector.broadcast %cst : f32 to vector<16x128xf32>
    %12 = arith.maximumf %10, %11 : vector<16x128xf32>
    %13 = arith.truncf %12 : vector<16x128xf32> to vector<16x128xbf16>
    %c0_6 = arith.constant 0 : index
    %c0_7 = arith.constant 0 : index
    %14 = vector.load %arg5[%c0_6, %c0_7] : memref<16x128xbf16, #tpu.memory_space<vmem>>, vector<16x128xbf16>
    tpu.vector_store %arg5[%c0_6, %c0_7], %13 {strides = array<i32>} : memref<16x128xbf16, #tpu.memory_space<vmem>>, vector<16x128xbf16>,
    %c0_8 = arith.constant 0 : index
    %c0_9 = arith.constant 0 : index
    %15 = vector.load %arg1[%c0_8, %c0_9] : memref<1x128xi32, #tpu.memory_space<vmem>>, vector<1x128xi32>
    %16 = tpu.iota {dimensions = array<i32: 0>} : vector<128x128xi32>
    %17 = vector.broadcast %15 : vector<1x128xi32> to vector<128x128xi32>
    %18 = arith.cmpi eq, %16, %17 : vector<128x128xi32>
    %19 = arith.extui %18 : vector<128x128xi1> to vector<128x128xi32>
    %20 = arith.sitofp %19 : vector<128x128xi32> to vector<128x128xf32>
    %21 = arith.truncf %20 : vector<128x128xf32> to vector<128x128xbf16>
    %c0_10 = arith.constant 0 : index
    %c0_11 = arith.constant 0 : index
    %22 = vector.load %arg6[%c0_10, %c0_11] : memref<16x128xf32, #tpu.memory_space<vmem>>, vector<16x128xf32>
    %cst_12 = arith.constant dense<0.000000e+00> : vector<16x128xf32>
    %23 = tpu.matmul %13, %21, %cst_12 {dimension_numbers = #tpu.dot_dimension_numbers<[1], [1], [0], [0], [0, 0, 1, 0], [], []>} : vector<16x128xbf16>, vector<128x128xbf16>, vector<16x128xf32> -> vector<16x128xf32>
    %24 = arith.addf %22, %23 : vector<16x128xf32>
    %c0_13 = arith.constant 0 : index
    %c0_14 = arith.constant 0 : index
    %25 = vector.load %arg6[%c0_13, %c0_14] : memref<16x128xf32, #tpu.memory_space<vmem>>, vector<16x128xf32>
    tpu.vector_store %arg6[%c0_13, %c0_14], %24 {strides = array<i32>} : memref<16x128xf32, #tpu.memory_space<vmem>>, vector<16x128xf32>,
    return
  }
  func.func @transform_0(%arg0: i32) -> (i32, i32) {
    %c0_i32 = arith.constant 0 : i32
    %c0_i32_0 = arith.constant 0 : i32
    return %c0_i32, %arg0 : i32, i32
  }
  func.func @transform_1(%arg0: i32) -> (i32, i32) {
    %c0_i32 = arith.constant 0 : i32
    %c0_i32_0 = arith.constant 0 : i32
    return %c0_i32, %arg0 : i32, i32
  }
  func.func @transform_2(%arg0: i32) -> (i32, i32) {
    %c0_i32 = arith.constant 0 : i32
    %c0_i32_0 = arith.constant 0 : i32
    %c0_i32_1 = arith.constant 0 : i32
    return %c0_i32, %c0_i32_0 : i32, i32
  }
  func.func @transform_3(%arg0: i32) -> (i32, i32) {
    %c0_i32 = arith.constant 0 : i32
    %c0_i32_0 = arith.constant 0 : i32
    %c0_i32_1 = arith.constant 0 : i32
    return %c0_i32, %c0_i32_0 : i32, i32
  }
  func.func @transform_4(%arg0: i32) -> (i32, i32) {
    %c0_i32 = arith.constant 0 : i32
    %c0_i32_0 = arith.constant 0 : i32
    return %c0_i32, %arg0 : i32, i32
  }
  func.func @transform_5(%arg0: i32) -> (i32, i32) {
    %c0_i32 = arith.constant 0 : i32
    %c0_i32_0 = arith.constant 0 : i32
    %c0_i32_1 = arith.constant 0 : i32
    return %c0_i32, %c0_i32_0 : i32, i32
  }
}

module attributes {stable_mosaic.version = 11 : i64} {
  func.func @_edge_linear_stats_kernel(%arg0: i32, %arg1: memref<1x128xi32, #tpu.memory_space<vmem>>, %arg2: memref<16x128xbf16, #tpu.memory_space<vmem>>, %arg3: memref<16x128xbf16, #tpu.memory_space<vmem>>, %arg4: memref<16x16xbf16, #tpu.memory_space<vmem>>, %arg5: memref<16x1xf32, #tpu.memory_space<vmem>>, %arg6: memref<16x1xf32, #tpu.memory_space<vmem>>, %arg7: memref<16x1xf32, #tpu.memory_space<vmem>>, %arg8: memref<16x128xbf16, #tpu.memory_space<vmem>>, %arg9: memref<16x1xf32, #tpu.memory_space<vmem>>, %arg10: memref<16x1xf32, #tpu.memory_space<vmem>>, %arg11: memref<16x1xf32, #tpu.memory_space<vmem>>, %arg12: memref<16x1xf32, #tpu.memory_space<vmem>>) attributes {dimension_semantics = [#tpu.dimension_semantics<arbitrary>], iteration_bounds = array<i64: 1>, scalar_prefetch = 0 : i64, scratch_operands = 2 : i64, tpu.core_type = #tpu.core_type<tc>, window_params = [{transform_indices = @transform_0, window_bounds = array<i64: 1, 128>}, {transform_indices = @transform_1, window_bounds = array<i64: 16, 128>}, {pipeline_mode = #tpu.pipeline_mode<synchronous>, transform_indices = @transform_2, window_bounds = array<i64: 16, 128>}, {pipeline_mode = #tpu.pipeline_mode<synchronous>, transform_indices = @transform_3, window_bounds = array<i64: 16, 16>}, {pipeline_mode = #tpu.pipeline_mode<synchronous>, transform_indices = @transform_4, window_bounds = array<i64: 16, 1>}, {pipeline_mode = #tpu.pipeline_mode<synchronous>, transform_indices = @transform_5, window_bounds = array<i64: 16, 1>}, {pipeline_mode = #tpu.pipeline_mode<synchronous>, transform_indices = @transform_6, window_bounds = array<i64: 16, 1>}, {transform_indices = @transform_7, window_bounds = array<i64: 16, 128>}, {pipeline_mode = #tpu.pipeline_mode<synchronous>, transform_indices = @transform_8, window_bounds = array<i64: 16, 1>}, {pipeline_mode = #tpu.pipeline_mode<synchronous>, transform_indices = @transform_9, window_bounds = array<i64: 16, 1>}]} {
    %c0_i32 = arith.constant 0 : i32
    %0 = arith.cmpi eq, %arg0, %c0_i32 : i32
    %1 = arith.extui %0 : i1 to i32
    %c0_i32_0 = arith.constant 0 : i32
    %2 = arith.cmpi ne, %1, %c0_i32_0 : i32
    scf.if %2 {
      %cst_19 = arith.constant 0.000000e+00 : f32
      %30 = vector.broadcast %cst_19 : f32 to vector<16x1xf32>
      %c0_20 = arith.constant 0 : index
      %c0_21 = arith.constant 0 : index
      %31 = vector.load %arg11[%c0_20, %c0_21] : memref<16x1xf32, #tpu.memory_space<vmem>>, vector<16x1xf32>
      tpu.vector_store %arg11[%c0_20, %c0_21], %30 {strides = array<i32>} : memref<16x1xf32, #tpu.memory_space<vmem>>, vector<16x1xf32>,
      %cst_22 = arith.constant 0.000000e+00 : f32
      %32 = vector.broadcast %cst_22 : f32 to vector<16x1xf32>
      %c0_23 = arith.constant 0 : index
      %c0_24 = arith.constant 0 : index
      %33 = vector.load %arg12[%c0_23, %c0_24] : memref<16x1xf32, #tpu.memory_space<vmem>>, vector<16x1xf32>
      tpu.vector_store %arg12[%c0_23, %c0_24], %32 {strides = array<i32>} : memref<16x1xf32, #tpu.memory_space<vmem>>, vector<16x1xf32>,
    } else {
    }
    %c0 = arith.constant 0 : index
    %c0_1 = arith.constant 0 : index
    %3 = vector.load %arg1[%c0, %c0_1] : memref<1x128xi32, #tpu.memory_space<vmem>>, vector<1x128xi32>
    %4 = tpu.iota {dimensions = array<i32: 0>} : vector<128x128xi32>
    %5 = vector.broadcast %3 : vector<1x128xi32> to vector<128x128xi32>
    %6 = arith.cmpi eq, %4, %5 : vector<128x128xi32>
    %7 = arith.extui %6 : vector<128x128xi1> to vector<128x128xi32>
    %8 = arith.sitofp %7 : vector<128x128xi32> to vector<128x128xf32>
    %9 = arith.truncf %8 : vector<128x128xf32> to vector<128x128xbf16>
    %c0_2 = arith.constant 0 : index
    %c0_3 = arith.constant 0 : index
    %10 = vector.load %arg3[%c0_2, %c0_3] : memref<16x128xbf16, #tpu.memory_space<vmem>>, vector<16x128xbf16>
    %cst = arith.constant dense<0.000000e+00> : vector<16x128xf32>
    %11 = tpu.matmul %10, %9, %cst {dimension_numbers = #tpu.dot_dimension_numbers<[1], [0], [0], [1], [0, 0, 1, 1], [], []>} : vector<16x128xbf16>, vector<128x128xbf16>, vector<16x128xf32> -> vector<16x128xf32>
    %c0_4 = arith.constant 0 : index
    %c0_5 = arith.constant 0 : index
    %12 = vector.load %arg4[%c0_4, %c0_5] : memref<16x16xbf16, #tpu.memory_space<vmem>>, vector<16x16xbf16>
    %c0_6 = arith.constant 0 : index
    %c0_7 = arith.constant 0 : index
    %13 = vector.load %arg2[%c0_6, %c0_7] : memref<16x128xbf16, #tpu.memory_space<vmem>>, vector<16x128xbf16>
    %cst_8 = arith.constant dense<0.000000e+00> : vector<16x128xf32>
    %14 = tpu.matmul %12, %13, %cst_8 {dimension_numbers = #tpu.dot_dimension_numbers<[1], [0], [0], [1], [0, 0, 1, 1], [], []>} : vector<16x16xbf16>, vector<16x128xbf16>, vector<16x128xf32> -> vector<16x128xf32>
    %15 = arith.addf %11, %14 : vector<16x128xf32>
    %c0_9 = arith.constant 0 : index
    %c0_10 = arith.constant 0 : index
    %16 = vector.load %arg5[%c0_9, %c0_10] : memref<16x1xf32, #tpu.memory_space<vmem>>, vector<16x1xf32>
    %17 = vector.broadcast %16 : vector<16x1xf32> to vector<16x128xf32>
    %18 = arith.addf %15, %17 : vector<16x128xf32>
    %19 = arith.truncf %18 : vector<16x128xf32> to vector<16x128xbf16>
    %c0_11 = arith.constant 0 : index
    %c0_12 = arith.constant 0 : index
    %20 = vector.load %arg8[%c0_11, %c0_12] : memref<16x128xbf16, #tpu.memory_space<vmem>>, vector<16x128xbf16>
    tpu.vector_store %arg8[%c0_11, %c0_12], %19 {strides = array<i32>} : memref<16x128xbf16, #tpu.memory_space<vmem>>, vector<16x128xbf16>,
    %c0_i32_13 = arith.constant 0 : i32
    %21 = arith.cmpi ne, %arg0, %c0_i32_13 : i32
    %22 = arith.extui %21 : i1 to i32
    %c0_i32_14 = arith.constant 0 : i32
    %23 = arith.cmpi ne, %22, %c0_i32_14 : i32
    scf.if %23 {
      %c0_19 = arith.constant 0 : index
      %c0_20 = arith.constant 0 : index
      %30 = vector.load %arg11[%c0_19, %c0_20] : memref<16x1xf32, #tpu.memory_space<vmem>>, vector<16x1xf32>
      %cst_21 = arith.constant dense<0.000000e+00> : vector<16xf32>
      %31 = vector.multi_reduction <add>, %18, %cst_21 [1] : vector<16x128xf32> to vector<16xf32>
      %32 = vector.shape_cast %31 : vector<16xf32> to vector<16x1xf32>
      %33 = arith.addf %30, %32 : vector<16x1xf32>
      %c0_22 = arith.constant 0 : index
      %c0_23 = arith.constant 0 : index
      %34 = vector.load %arg11[%c0_22, %c0_23] : memref<16x1xf32, #tpu.memory_space<vmem>>, vector<16x1xf32>
      tpu.vector_store %arg11[%c0_22, %c0_23], %33 {strides = array<i32>} : memref<16x1xf32, #tpu.memory_space<vmem>>, vector<16x1xf32>,
      %c0_24 = arith.constant 0 : index
      %c0_25 = arith.constant 0 : index
      %35 = vector.load %arg12[%c0_24, %c0_25] : memref<16x1xf32, #tpu.memory_space<vmem>>, vector<16x1xf32>
      %36 = arith.mulf %18, %18 : vector<16x128xf32>
      %cst_26 = arith.constant dense<0.000000e+00> : vector<16xf32>
      %37 = vector.multi_reduction <add>, %36, %cst_26 [1] : vector<16x128xf32> to vector<16xf32>
      %38 = vector.shape_cast %37 : vector<16xf32> to vector<16x1xf32>
      %39 = arith.addf %35, %38 : vector<16x1xf32>
      %c0_27 = arith.constant 0 : index
      %c0_28 = arith.constant 0 : index
      %40 = vector.load %arg12[%c0_27, %c0_28] : memref<16x1xf32, #tpu.memory_space<vmem>>, vector<16x1xf32>
      tpu.vector_store %arg12[%c0_27, %c0_28], %39 {strides = array<i32>} : memref<16x1xf32, #tpu.memory_space<vmem>>, vector<16x1xf32>,
    } else {
    }
    %c0_i32_15 = arith.constant 0 : i32
    %24 = arith.cmpi eq, %arg0, %c0_i32_15 : i32
    %25 = arith.extui %24 : i1 to i32
    %c0_i32_16 = arith.constant 0 : i32
    %26 = arith.cmpi ne, %25, %c0_i32_16 : i32
    scf.if %26 {
      %30 = tpu.iota {dimensions = array<i32: 1>} : vector<1x128xi32>
      %c16_i32 = arith.constant 16 : i32
      %31 = vector.broadcast %c16_i32 : i32 to vector<1x128xi32>
      %32 = arith.cmpi slt, %30, %31 : vector<1x128xi32>
      %33 = arith.extui %32 : vector<1x128xi1> to vector<1x128xi32>
      %34 = arith.sitofp %33 : vector<1x128xi32> to vector<1x128xf32>
      %c0_19 = arith.constant 0 : index
      %c0_20 = arith.constant 0 : index
      %35 = vector.load %arg11[%c0_19, %c0_20] : memref<16x1xf32, #tpu.memory_space<vmem>>, vector<16x1xf32>
      %36 = vector.broadcast %34 : vector<1x128xf32> to vector<16x128xf32>
      %37 = arith.mulf %18, %36 : vector<16x128xf32>
      %cst_21 = arith.constant dense<0.000000e+00> : vector<16xf32>
      %38 = vector.multi_reduction <add>, %37, %cst_21 [1] : vector<16x128xf32> to vector<16xf32>
      %39 = vector.shape_cast %38 : vector<16xf32> to vector<16x1xf32>
      %40 = arith.addf %35, %39 : vector<16x1xf32>
      %c0_22 = arith.constant 0 : index
      %c0_23 = arith.constant 0 : index
      %41 = vector.load %arg11[%c0_22, %c0_23] : memref<16x1xf32, #tpu.memory_space<vmem>>, vector<16x1xf32>
      tpu.vector_store %arg11[%c0_22, %c0_23], %40 {strides = array<i32>} : memref<16x1xf32, #tpu.memory_space<vmem>>, vector<16x1xf32>,
      %c0_24 = arith.constant 0 : index
      %c0_25 = arith.constant 0 : index
      %42 = vector.load %arg12[%c0_24, %c0_25] : memref<16x1xf32, #tpu.memory_space<vmem>>, vector<16x1xf32>
      %43 = arith.mulf %18, %18 : vector<16x128xf32>
      %44 = vector.broadcast %34 : vector<1x128xf32> to vector<16x128xf32>
      %45 = arith.mulf %43, %44 : vector<16x128xf32>
      %cst_26 = arith.constant dense<0.000000e+00> : vector<16xf32>
      %46 = vector.multi_reduction <add>, %45, %cst_26 [1] : vector<16x128xf32> to vector<16xf32>
      %47 = vector.shape_cast %46 : vector<16xf32> to vector<16x1xf32>
      %48 = arith.addf %42, %47 : vector<16x1xf32>
      %c0_27 = arith.constant 0 : index
      %c0_28 = arith.constant 0 : index
      %49 = vector.load %arg12[%c0_27, %c0_28] : memref<16x1xf32, #tpu.memory_space<vmem>>, vector<16x1xf32>
      tpu.vector_store %arg12[%c0_27, %c0_28], %48 {strides = array<i32>} : memref<16x1xf32, #tpu.memory_space<vmem>>, vector<16x1xf32>,
    } else {
    }
    %c0_i32_17 = arith.constant 0 : i32
    %27 = arith.cmpi eq, %arg0, %c0_i32_17 : i32
    %28 = arith.extui %27 : i1 to i32
    %c0_i32_18 = arith.constant 0 : i32
    %29 = arith.cmpi ne, %28, %c0_i32_18 : i32
    scf.if %29 {
      %c0_19 = arith.constant 0 : index
      %c0_20 = arith.constant 0 : index
      %30 = vector.load %arg11[%c0_19, %c0_20] : memref<16x1xf32, #tpu.memory_space<vmem>>, vector<16x1xf32>
      %cst_21 = arith.constant 6.250000e-02 : f32
      %31 = vector.broadcast %cst_21 : f32 to vector<16x1xf32>
      %32 = arith.mulf %30, %31 : vector<16x1xf32>
      %c0_22 = arith.constant 0 : index
      %c0_23 = arith.constant 0 : index
      %33 = vector.load %arg12[%c0_22, %c0_23] : memref<16x1xf32, #tpu.memory_space<vmem>>, vector<16x1xf32>
      %cst_24 = arith.constant 6.250000e-02 : f32
      %34 = vector.broadcast %cst_24 : f32 to vector<16x1xf32>
      %35 = arith.mulf %33, %34 : vector<16x1xf32>
      %36 = arith.mulf %32, %32 : vector<16x1xf32>
      %37 = arith.subf %35, %36 : vector<16x1xf32>
      %cst_25 = arith.constant 0.000000e+00 : f32
      %38 = vector.broadcast %cst_25 : f32 to vector<16x1xf32>
      %39 = arith.maximumf %37, %38 : vector<16x1xf32>
      %c0_26 = arith.constant 0 : index
      %c0_27 = arith.constant 0 : index
      %40 = vector.load %arg6[%c0_26, %c0_27] : memref<16x1xf32, #tpu.memory_space<vmem>>, vector<16x1xf32>
      %cst_28 = arith.constant 9.99999974E-6 : f32
      %41 = vector.broadcast %cst_28 : f32 to vector<16x1xf32>
      %42 = arith.addf %39, %41 : vector<16x1xf32>
      %43 = math.rsqrt %42 : vector<16x1xf32>
      %44 = arith.mulf %40, %43 : vector<16x1xf32>
      %c0_29 = arith.constant 0 : index
      %c0_30 = arith.constant 0 : index
      %45 = vector.load %arg9[%c0_29, %c0_30] : memref<16x1xf32, #tpu.memory_space<vmem>>, vector<16x1xf32>
      tpu.vector_store %arg9[%c0_29, %c0_30], %44 {strides = array<i32>} : memref<16x1xf32, #tpu.memory_space<vmem>>, vector<16x1xf32>,
      %c0_31 = arith.constant 0 : index
      %c0_32 = arith.constant 0 : index
      %46 = vector.load %arg7[%c0_31, %c0_32] : memref<16x1xf32, #tpu.memory_space<vmem>>, vector<16x1xf32>
      %47 = arith.mulf %32, %44 : vector<16x1xf32>
      %48 = arith.subf %46, %47 : vector<16x1xf32>
      %c0_33 = arith.constant 0 : index
      %c0_34 = arith.constant 0 : index
      %49 = vector.load %arg10[%c0_33, %c0_34] : memref<16x1xf32, #tpu.memory_space<vmem>>, vector<16x1xf32>
      tpu.vector_store %arg10[%c0_33, %c0_34], %48 {strides = array<i32>} : memref<16x1xf32, #tpu.memory_space<vmem>>, vector<16x1xf32>,
    } else {
    }
    return
  }
  func.func @transform_0(%arg0: i32) -> (i32, i32) {
    %c0_i32 = arith.constant 0 : i32
    %c0_i32_0 = arith.constant 0 : i32
    return %c0_i32, %arg0 : i32, i32
  }
  func.func @transform_1(%arg0: i32) -> (i32, i32) {
    %c0_i32 = arith.constant 0 : i32
    %c0_i32_0 = arith.constant 0 : i32
    return %c0_i32, %arg0 : i32, i32
  }
  func.func @transform_2(%arg0: i32) -> (i32, i32) {
    %c0_i32 = arith.constant 0 : i32
    %c0_i32_0 = arith.constant 0 : i32
    %c0_i32_1 = arith.constant 0 : i32
    return %c0_i32, %c0_i32_0 : i32, i32
  }
  func.func @transform_3(%arg0: i32) -> (i32, i32) {
    %c0_i32 = arith.constant 0 : i32
    %c0_i32_0 = arith.constant 0 : i32
    %c0_i32_1 = arith.constant 0 : i32
    return %c0_i32, %c0_i32_0 : i32, i32
  }
  func.func @transform_4(%arg0: i32) -> (i32, i32) {
    %c0_i32 = arith.constant 0 : i32
    %c0_i32_0 = arith.constant 0 : i32
    %c0_i32_1 = arith.constant 0 : i32
    return %c0_i32, %c0_i32_0 : i32, i32
  }
  func.func @transform_5(%arg0: i32) -> (i32, i32) {
    %c0_i32 = arith.constant 0 : i32
    %c0_i32_0 = arith.constant 0 : i32
    %c0_i32_1 = arith.constant 0 : i32
    return %c0_i32, %c0_i32_0 : i32, i32
  }
  func.func @transform_6(%arg0: i32) -> (i32, i32) {
    %c0_i32 = arith.constant 0 : i32
    %c0_i32_0 = arith.constant 0 : i32
    %c0_i32_1 = arith.constant 0 : i32
    return %c0_i32, %c0_i32_0 : i32, i32
  }
  func.func @transform_7(%arg0: i32) -> (i32, i32) {
    %c0_i32 = arith.constant 0 : i32
    %c0_i32_0 = arith.constant 0 : i32
    return %c0_i32, %arg0 : i32, i32
  }
  func.func @transform_8(%arg0: i32) -> (i32, i32) {
    %c0_i32 = arith.constant 0 : i32
    %c0_i32_0 = arith.constant 0 : i32
    %c0_i32_1 = arith.constant 0 : i32
    return %c0_i32, %c0_i32_0 : i32, i32
  }
  func.func @transform_9(%arg0: i32) -> (i32, i32) {
    %c0_i32 = arith.constant 0 : i32
    %c0_i32_0 = arith.constant 0 : i32
    %c0_i32_1 = arith.constant 0 : i32
    return %c0_i32, %c0_i32_0 : i32, i32
  }
}

</mosaic_0001>

<llo_original>
// kernel: simple_edge_encoder.3
$region0: #{simple_edge_encoder.3}
  #allocation0 [shape = 'u32[]', space=smem, size = 0x4, offset = 0x4, fixed_abs, tag = 'smem constant byte address 0x4 - core index']
  #allocation1 [shape = 'u32[144,128]{1,0:T(1,128)}', space=vmem, size = 0x12000, scoped, tag = 'internal scratch']
  %s0 = inlined_call_operand.hbm [shape: s32[1,128], index: 0, kind: input, shape index: {}]
  %s1 = inlined_call_operand.hbm [shape: bf16[16,128], index: 1, kind: input, shape index: {}]
  %s2 = inlined_call_operand.hbm [shape: f32[16,128], index: 2, kind: output, shape index: {}]
  %s3 = sld [smem:[#allocation0]]
  $region30: #{simple_edge_encoder.3} parent=0
    _
  %s5 = ssub.s32 1, %s3
  %s6 = scalar_select 0, %s5, %s3
  $region1: #{simple_edge_encoder.3} parent=0
    #allocation2 [shape = 'u8[512]{0}', space=vmem, size = 0x400, scoped, tag = 'input window, operand 0, single buffered']
    #allocation3 [shape = 's32[1]{0}', space=sflag, size = 0x4, scoped, tag = 'scoped memory for simple_edge_encoder.3']
    #allocation4 [shape = 's32[1]{0}', space=sflag, size = 0x4, scoped, tag = 'scoped memory for simple_edge_encoder.3']
    #allocation5 [shape = 'u8[4096]{0}', space=vmem, size = 0x1000, scoped, tag = 'input window, operand 1, single buffered']
    #allocation6 [shape = 's32[1]{0}', space=sflag, size = 0x4, scoped, tag = 'scoped memory for simple_edge_encoder.3']
    #allocation7 [shape = 'u8[8192]{0}', space=vmem, size = 0x2000, scoped, tag = 'output window, operand 0, single buffered']
    %7 = vsyncpa [#allocation3], 0
    %8 = vsyncpa [#allocation6], 0
    %9 = vsyncpa [#allocation4], 0
    // Predicated region
    $region2: #{simple_edge_encoder.3} parent=1 // pred_check
      _
    $region3: #{simple_edge_encoder.3} parent=1 // pred_check_branch
      %11 = sbr.rel (0) target = $region5
    $region4: #{simple_edge_encoder.3} parent=1 // pred_region
      %s13 = ssub.s32 16, 16
      %14 = vsyncadd [#allocation3], %s13
      %s16 = sshll.u32 [#allocation2], 4
      %s17 = int_to_ptr.vmem [resolvable:$true] %s16
      %19 = dma.hbm_to_vmem [thread:$0]  %s0, 16, %s17, [#allocation3]
    $region5: #{simple_edge_encoder.3} parent=1 // pred_fallthru
      _
    // Predicated region
    $region6: #{simple_edge_encoder.3} parent=1 // pred_check
      _
    $region7: #{simple_edge_encoder.3} parent=1 // pred_check_branch
      %21 = sbr.rel (0) target = $region9
    $region8: #{simple_edge_encoder.3} parent=1 // pred_region
      %s23 = ssub.s32 128, 128
      %24 = vsyncadd [#allocation6], %s23
      %s25 = sshll.u32 [#allocation5], 4
      %s26 = int_to_ptr.vmem [resolvable:$true] %s25
      %31 = dma.hbm_to_vmem [thread:$0]  %s1, 128, %s26, [#allocation6], 64, 64, 4
    $region9: #{simple_edge_encoder.3} parent=1 // pred_fallthru
      _
    // Predicated region
    $region10: #{simple_edge_encoder.3} parent=1 // pred_check
      _
    $region11: #{simple_edge_encoder.3} parent=1 // pred_check_branch
      %33 = sbr.rel (0) target = $region13
    $region12: #{simple_edge_encoder.3} parent=1 // pred_region
      %34 = dma.done [#allocation3], 16
    $region13: #{simple_edge_encoder.3} parent=1 // pred_fallthru
      _
    // Predicated region
    $region14: #{simple_edge_encoder.3} parent=1 // pred_check
      _
    $region15: #{simple_edge_encoder.3} parent=1 // pred_check_branch
      %36 = sbr.rel (0) target = $region17
    $region16: #{simple_edge_encoder.3} parent=1 // pred_region
      %37 = dma.done [#allocation6], 128
    $region17: #{simple_edge_encoder.3} parent=1 // pred_fallthru
      _
    %p39 = scmp.eq.s32.totalorder 0, 0
    // Predicated region
    $region18: #{simple_edge_encoder.3} parent=1 // pred_check
      %p40 = pneg %p39
    $region19: #{simple_edge_encoder.3} parent=1 // pred_check_branch
      %42 = sbr.rel (%p40) target = $region21
    $region20: #{simple_edge_encoder.3} parent=1 // pred_region
      %43 = vst [vmem:[#allocation7] sm:$0xff] 0.0
      %44 = vst [vmem:[#allocation7 + $0x8] sm:$0xff] 0.0
    $region21: #{simple_edge_encoder.3} parent=1 // pred_fallthru
      _
    %v45 = vld [vmem:[#allocation2] sm:$0x1]
    %v46 = vlaneseq
    %v47 = vshrl.u32 %v46, 7
    %v48 = vadd.s32 %v47, 8
    %v49 = vadd.s32 %v47, 16
    %v50 = vadd.s32 %v47, 24
    %v51 = vadd.s32 %v47, 32
    %v52 = vadd.s32 %v47, 40
    %v53 = vadd.s32 %v47, 48
    %v54 = vadd.s32 %v47, 56
    %v55 = vadd.s32 %v47, 64
    %v56 = vadd.s32 %v47, 72
    %v57 = vadd.s32 %v47, 80
    %v58 = vadd.s32 %v47, 88
    %v59 = vadd.s32 %v47, 96
    %v60 = vadd.s32 %v47, 104
    %v61 = vadd.s32 %v47, 112
    %v62 = vadd.s32 %v47, 120
    %v63 = vlaneseq
    %v64 = vshrl.u32 %v63, 7
    %v65 = vsub.s32 0, %v64
    %v66 = vrot.slane %v45, %v65
    %vm67 = vcmp.eq.s32.totalorder %v47, %v66
    %vm68 = vcmp.eq.s32.totalorder %v48, %v66
    %vm69 = vcmp.eq.s32.totalorder %v49, %v66
    %vm70 = vcmp.eq.s32.totalorder %v50, %v66
    %vm71 = vcmp.eq.s32.totalorder %v51, %v66
    %vm72 = vcmp.eq.s32.totalorder %v52, %v66
    %vm73 = vcmp.eq.s32.totalorder %v53, %v66
    %vm74 = vcmp.eq.s32.totalorder %v54, %v66
    %vm75 = vcmp.eq.s32.totalorder %v55, %v66
    %vm76 = vcmp.eq.s32.totalorder %v56, %v66
    %vm77 = vcmp.eq.s32.totalorder %v57, %v66
    %vm78 = vcmp.eq.s32.totalorder %v58, %v66
    %vm79 = vcmp.eq.s32.totalorder %v59, %v66
    %vm80 = vcmp.eq.s32.totalorder %v60, %v66
    %vm81 = vcmp.eq.s32.totalorder %v61, %v66
    %vm82 = vcmp.eq.s32.totalorder %v62, %v66
    %v83 = vsel %vm67, 1, 0
    %v84 = vsel %vm68, 1, 0
    %v85 = vsel %vm69, 1, 0
    %v86 = vsel %vm70, 1, 0
    %v87 = vsel %vm71, 1, 0
    %v88 = vsel %vm72, 1, 0
    %v89 = vsel %vm73, 1, 0
    %v90 = vsel %vm74, 1, 0
    %v91 = vsel %vm75, 1, 0
    %v92 = vsel %vm76, 1, 0
    %v93 = vsel %vm77, 1, 0
    %v94 = vsel %vm78, 1, 0
    %v95 = vsel %vm79, 1, 0
    %v96 = vsel %vm80, 1, 0
    %v97 = vsel %vm81, 1, 0
    %v98 = vsel %vm82, 1, 0
    %v99 = vcvt.s32.f32 %v83
    %v100 = vcvt.s32.f32 %v84
    %v101 = vcvt.s32.f32 %v85
    %v102 = vcvt.s32.f32 %v86
    %v103 = vcvt.s32.f32 %v87
    %v104 = vcvt.s32.f32 %v88
    %v105 = vcvt.s32.f32 %v89
    %v106 = vcvt.s32.f32 %v90
    %v107 = vcvt.s32.f32 %v91
    %v108 = vcvt.s32.f32 %v92
    %v109 = vcvt.s32.f32 %v93
    %v110 = vcvt.s32.f32 %v94
    %v111 = vcvt.s32.f32 %v95
    %v112 = vcvt.s32.f32 %v96
    %v113 = vcvt.s32.f32 %v97
    %v114 = vcvt.s32.f32 %v98
    %v115 = vpack.c.bf16 %v100, %v99
    %v116 = vpack.c.bf16 %v102, %v101
    %v117 = vpack.c.bf16 %v104, %v103
    %v118 = vpack.c.bf16 %v106, %v105
    %v119 = vpack.c.bf16 %v108, %v107
    %v120 = vpack.c.bf16 %v110, %v109
    %v121 = vpack.c.bf16 %v112, %v111
    %v122 = vpack.c.bf16 %v114, %v113
    %v123 = vld [vmem:[#allocation7] sm:$0xff]
    %v124 = vld [vmem:[#allocation7 + $0x8] sm:$0xff]
    %v125 = vld [vmem:[#allocation5] sm:$0xf]
    %v126 = vld [vmem:[#allocation5 + $0x4] sm:$0xf]
    %v129 = vunpack.c.l.b16 %v125
    %v130 = vunpack.c.l.b16 %v126
    %v131 = vpack.c.b16 %v130, %v129
    %133 = vmatprep.subr.bf16.mxu0 0
    %134 = vmatpush1.bf16.xpose.msra.mxu0 %v115
    %135 = vmatprep.subr.bf16.mxu0 0
    %136 = vmatpush1.bf16.xpose.msra.mxu0 %v116
    %137 = vmatprep.subr.bf16.mxu0 0
    %138 = vmatpush1.bf16.xpose.msra.mxu0 %v117
    %139 = vmatprep.subr.bf16.mxu0 0
    %140 = vmatpush1.bf16.xpose.msra.mxu0 %v118
    %141 = vmatprep.subr.bf16.mxu0 0
    %142 = vmatpush1.bf16.xpose.msra.mxu0 %v119
    %143 = vmatprep.subr.bf16.mxu0 0
    %144 = vmatpush1.bf16.xpose.msra.mxu0 %v120
    %145 = vmatprep.subr.bf16.mxu0 0
    %146 = vmatpush1.bf16.xpose.msra.mxu0 %v121
    %147 = vmatprep.subr.bf16.mxu0 0
    %148 = vmatpush1.bf16.xpose.msra.mxu0 %v122
    %149 = vmatprep.subr.bf16.mxu0 0
    %150 = vmatpush1.bf16.xpose.msra.mxu0 0
    %151 = vmatprep.subr.bf16.mxu0 0
    %152 = vmatpush1.bf16.xpose.msra.mxu0 0
    %153 = vmatprep.subr.bf16.mxu0 0
    %154 = vmatpush1.bf16.xpose.msra.mxu0 0
    %155 = vmatprep.subr.bf16.mxu0 0
    %156 = vmatpush1.bf16.xpose.msra.mxu0 0
    %157 = vmatprep.subr.bf16.mxu0 0
    %158 = vmatpush1.bf16.xpose.msra.mxu0 0
    %159 = vmatprep.subr.bf16.mxu0 0
    %160 = vmatpush1.bf16.xpose.msra.mxu0 0
    %161 = vmatprep.subr.bf16.mxu0 0
    %162 = vmatpush1.bf16.xpose.msra.mxu0 0
    %163 = vmatprep.subr.bf16.mxu0 0
    %164 = vmatpush1.bf16.xpose.msra.mxu0 0
    %165 = vmatprep.mubr.bf16.mxu0 0
    %166 = vmatmul.mubr.bf16.gmra.mrb[0].mxu0 %v131
    %v167 = vpop.f32.mrb[0].mxu0
    %v168 = vadd.f32 0.0, %v167
    %v169 = vpop.f32.mrb[0].mxu0
    %v170 = vpop.f32.mrb[0].mxu0
    %v171 = vadd.f32 0.0, %v170
    %v172 = vpop.f32.mrb[0].mxu0
    %173 = vdwg.mxu0
    %v174 = vadd.f32 %v123, %v168
    %v175 = vadd.f32 %v124, %v171
    %176 = vst [vmem:[#allocation7] sm:$0xff] %v174
    %177 = vst [vmem:[#allocation7 + $0x8] sm:$0xff] %v175
    // Predicated region
    $region22: #{simple_edge_encoder.3} parent=1 // pred_check
      _
    $region23: #{simple_edge_encoder.3} parent=1 // pred_check_branch
      %179 = sbr.rel (0) target = $region25
    $region24: #{simple_edge_encoder.3} parent=1 // pred_region
      %s181 = ssub.s32 256, 256
      %182 = vsyncadd [#allocation4], %s181
      %s183 = sshll.u32 [#allocation7], 4
      %s184 = int_to_ptr.vmem [resolvable:$true] %s183
      %189 = dma.vmem_to_hbm [thread:$0]  %s184, 256, %s2, [#allocation4], 128, 128, 8
    $region25: #{simple_edge_encoder.3} parent=1 // pred_fallthru
      _
    // Predicated region
    $region26: #{simple_edge_encoder.3} parent=1 // pred_check
      _
    $region27: #{simple_edge_encoder.3} parent=1 // pred_check_branch
      %191 = sbr.rel (0) target = $region29
    $region28: #{simple_edge_encoder.3} parent=1 // pred_region
      %192 = dma.done [#allocation4], 256
    $region29: #{simple_edge_encoder.3} parent=1 // pred_fallthru
      _
    %193 = vsyncpa [#allocation3], 1
    %194 = vsyncpa [#allocation6], 1
    %195 = vsyncpa [#allocation4], 1

// kernel: simple_edge_encoder.5
$region0: #{simple_edge_encoder.5}
  #allocation0 [shape = 'u32[]', space=smem, size = 0x4, offset = 0x4, fixed_abs, tag = 'smem constant byte address 0x4 - core index']
  #allocation1 [shape = 'u32[144,128]{1,0:T(1,128)}', space=vmem, size = 0x12000, scoped, tag = 'internal scratch']
  %s0 = inlined_call_operand.hbm [shape: s32[1,128], index: 0, kind: input, shape index: {}]
  %s1 = inlined_call_operand.hbm [shape: bf16[16,128], index: 1, kind: input, shape index: {}]
  %s2 = inlined_call_operand.hbm [shape: f32[16,1], index: 2, kind: input, shape index: {}]
  %s3 = inlined_call_operand.hbm [shape: f32[16,1], index: 3, kind: input, shape index: {}]
  %s4 = inlined_call_operand.hbm [shape: bf16[16,128], index: 4, kind: output, shape index: {0}]
  %s5 = inlined_call_operand.hbm [shape: f32[16,128], index: 5, kind: output, shape index: {1}]
  %6 = xla_tuple %s4, %s5
  %s7 = sld [smem:[#allocation0]]
  $region54: #{simple_edge_encoder.5} parent=0
    _
  %s9 = ssub.s32 1, %s7
  %s10 = scalar_select 0, %s9, %s7
  $region1: #{simple_edge_encoder.5} parent=0
    #allocation2 [shape = 'u8[512]{0}', space=vmem, size = 0x400, scoped, tag = 'input window, operand 0, single buffered']
    #allocation3 [shape = 's32[1]{0}', space=sflag, size = 0x4, scoped, tag = 'scoped memory for simple_edge_encoder.5']
    #allocation4 [shape = 's32[1]{0}', space=sflag, size = 0x4, scoped, tag = 'scoped memory for simple_edge_encoder.5']
    #allocation5 [shape = 'u8[4096]{0}', space=vmem, size = 0x1000, scoped, tag = 'input window, operand 1, single buffered']
    #allocation6 [shape = 's32[1]{0}', space=sflag, size = 0x4, scoped, tag = 'scoped memory for simple_edge_encoder.5']
    #allocation7 [shape = 'u8[8192]{0}', space=vmem, size = 0x2000, scoped, tag = 'input window, operand 2, single buffered']
    #allocation8 [shape = 'u8[8192]{0}', space=vmem, size = 0x2000, scoped, tag = 'input window, operand 3, single buffered']
    #allocation9 [shape = 's32[1]{0}', space=sflag, size = 0x4, scoped, tag = 'scoped memory for simple_edge_encoder.5']
    #allocation10 [shape = 'u8[4096]{0}', space=vmem, size = 0x1000, scoped, tag = 'output window, operand 0, single buffered']
    #allocation11 [shape = 'u8[8192]{0}', space=vmem, size = 0x2000, scoped, tag = 'output window, operand 1, single buffered']
    #allocation12 [shape = 's32[1]{0}', space=sflag, size = 0x4, scoped, tag = 'scoped memory for simple_edge_encoder.5']
    %11 = vsyncpa [#allocation3], 0
    %12 = vsyncpa [#allocation6], 0
    %13 = vsyncpa [#allocation9], 0
    %14 = vsyncpa [#allocation4], 0
    %15 = vsyncpa [#allocation12], 0
    // Predicated region
    $region2: #{simple_edge_encoder.5} parent=1 // pred_check
      _
    $region3: #{simple_edge_encoder.5} parent=1 // pred_check_branch
      %17 = sbr.rel (0) target = $region5
    $region4: #{simple_edge_encoder.5} parent=1 // pred_region
      %s19 = ssub.s32 16, 16
      %20 = vsyncadd [#allocation3], %s19
      %s22 = sshll.u32 [#allocation2], 4
      %s23 = int_to_ptr.vmem [resolvable:$true] %s22
      %25 = dma.hbm_to_vmem [thread:$0]  %s0, 16, %s23, [#allocation3]
    $region5: #{simple_edge_encoder.5} parent=1 // pred_fallthru
      _
    // Predicated region
    $region6: #{simple_edge_encoder.5} parent=1 // pred_check
      _
    $region7: #{simple_edge_encoder.5} parent=1 // pred_check_branch
      %27 = sbr.rel (0) target = $region9
    $region8: #{simple_edge_encoder.5} parent=1 // pred_region
      %s29 = ssub.s32 128, 128
      %30 = vsyncadd [#allocation6], %s29
      %s31 = sshll.u32 [#allocation5], 4
      %s32 = int_to_ptr.vmem [resolvable:$true] %s31
      %37 = dma.hbm_to_vmem [thread:$0]  %s1, 128, %s32, [#allocation6], 64, 64, 4
    $region9: #{simple_edge_encoder.5} parent=1 // pred_fallthru
      _
    // Predicated region
    $region10: #{simple_edge_encoder.5} parent=1 // pred_check
      _
    $region11: #{simple_edge_encoder.5} parent=1 // pred_check_branch
      %39 = sbr.rel (0) target = $region13
    $region12: #{simple_edge_encoder.5} parent=1 // pred_region
      %s41 = ssub.s32 256, 256
      %42 = vsyncadd [#allocation6], %s41
      %s43 = sshll.u32 [#allocation7], 4
      %s44 = int_to_ptr.vmem [resolvable:$true] %s43
      %49 = dma.hbm_to_vmem [thread:$0]  %s2, 256, %s44, [#allocation6], 128, 128, 8
    $region13: #{simple_edge_encoder.5} parent=1 // pred_fallthru
      _
    // Predicated region
    $region14: #{simple_edge_encoder.5} parent=1 // pred_check
      _
    $region15: #{simple_edge_encoder.5} parent=1 // pred_check_branch
      %51 = sbr.rel (0) target = $region17
    $region16: #{simple_edge_encoder.5} parent=1 // pred_region
      %s53 = ssub.s32 256, 256
      %54 = vsyncadd [#allocation9], %s53
      %s55 = sshll.u32 [#allocation8], 4
      %s56 = int_to_ptr.vmem [resolvable:$true] %s55
      %61 = dma.hbm_to_vmem [thread:$0]  %s3, 256, %s56, [#allocation9], 128, 128, 8
    $region17: #{simple_edge_encoder.5} parent=1 // pred_fallthru
      _
    // Predicated region
    $region18: #{simple_edge_encoder.5} parent=1 // pred_check
      _
    $region19: #{simple_edge_encoder.5} parent=1 // pred_check_branch
      %63 = sbr.rel (0) target = $region21
    $region20: #{simple_edge_encoder.5} parent=1 // pred_region
      %64 = dma.done [#allocation3], 16
    $region21: #{simple_edge_encoder.5} parent=1 // pred_fallthru
      _
    // Predicated region
    $region22: #{simple_edge_encoder.5} parent=1 // pred_check
      _
    $region23: #{simple_edge_encoder.5} parent=1 // pred_check_branch
      %66 = sbr.rel (0) target = $region25
    $region24: #{simple_edge_encoder.5} parent=1 // pred_region
      %67 = dma.done [#allocation6], 128
    $region25: #{simple_edge_encoder.5} parent=1 // pred_fallthru
      _
    // Predicated region
    $region26: #{simple_edge_encoder.5} parent=1 // pred_check
      _
    $region27: #{simple_edge_encoder.5} parent=1 // pred_check_branch
      %69 = sbr.rel (0) target = $region29
    $region28: #{simple_edge_encoder.5} parent=1 // pred_region
      %70 = dma.done [#allocation6], 256
    $region29: #{simple_edge_encoder.5} parent=1 // pred_fallthru
      _
    // Predicated region
    $region30: #{simple_edge_encoder.5} parent=1 // pred_check
      _
    $region31: #{simple_edge_encoder.5} parent=1 // pred_check_branch
      %72 = sbr.rel (0) target = $region33
    $region32: #{simple_edge_encoder.5} parent=1 // pred_region
      %73 = dma.done [#allocation9], 256
    $region33: #{simple_edge_encoder.5} parent=1 // pred_fallthru
      _
    %p75 = scmp.eq.s32.totalorder 0, 0
    // Predicated region
    $region34: #{simple_edge_encoder.5} parent=1 // pred_check
      %p76 = pneg %p75
    $region35: #{simple_edge_encoder.5} parent=1 // pred_check_branch
      %78 = sbr.rel (%p76) target = $region37
    $region36: #{simple_edge_encoder.5} parent=1 // pred_region
      %79 = vst [vmem:[#allocation11] sm:$0xff] 0.0
      %80 = vst [vmem:[#allocation11 + $0x8] sm:$0xff] 0.0
    $region37: #{simple_edge_encoder.5} parent=1 // pred_fallthru
      _
    %v81 = vld [vmem:[#allocation5] sm:$0xf]
    %v82 = vld [vmem:[#allocation5 + $0x4] sm:$0xf]
    %v83 = vunpack.c.l.bf16 %v81
    %v84 = vunpack.c.l.bf16 %v82
    %v85 = vld [vmem:[#allocation7] sm:$0xff]
    %v86 = vld [vmem:[#allocation7 + $0x8] sm:$0xff]
    %88 = vset.pattern.permute.xlu0 0
    %89 = vperm.xlu0 %88, %v85
    %v90 = vpop.permute.xlu0 %89
    %93 = vset.pattern.permute.xlu0 0
    %94 = vperm.xlu0 %93, %v86
    %v95 = vpop.permute.xlu0 %94
    %v97 = vmul.f32 %v83, %v90
    %v98 = vmul.f32 %v84, %v95
    %v99 = vld [vmem:[#allocation8] sm:$0xff]
    %v100 = vld [vmem:[#allocation8 + $0x8] sm:$0xff]
    %102 = vset.pattern.permute.xlu0 0
    %103 = vperm.xlu0 %102, %v99
    %v104 = vpop.permute.xlu0 %103
    %107 = vset.pattern.permute.xlu0 0
    %108 = vperm.xlu0 %107, %v100
    %v109 = vpop.permute.xlu0 %108
    %v111 = vadd.f32 %v97, %v104
    %v112 = vadd.f32 %v98, %v109
    %v113 = vmax.f32 %v111, 0.0
    %v114 = vmax.f32 %v112, 0.0
    %v115 = vpack.c.bf16 %v114, %v113
    %v117 = vunpack.c.l.b16 %v115
    %v118 = vunpack.c.h.b16 %v115
    %v119 = vpack.c.b16 %v117, %v117
    %v120 = vpack.c.b16 %v118, %v118
    %123 = vst [vmem:[#allocation10] sm:$0xf] %v119
    %124 = vst [vmem:[#allocation10 + $0x4] sm:$0xf] %v120
    %v125 = vld [vmem:[#allocation2] sm:$0x1]
    %v126 = vlaneseq
    %v127 = vshrl.u32 %v126, 7
    %v128 = vadd.s32 %v127, 8
    %v129 = vadd.s32 %v127, 16
    %v130 = vadd.s32 %v127, 24
    %v131 = vadd.s32 %v127, 32
    %v132 = vadd.s32 %v127, 40
    %v133 = vadd.s32 %v127, 48
    %v134 = vadd.s32 %v127, 56
    %v135 = vadd.s32 %v127, 64
    %v136 = vadd.s32 %v127, 72
    %v137 = vadd.s32 %v127, 80
    %v138 = vadd.s32 %v127, 88
    %v139 = vadd.s32 %v127, 96
    %v140 = vadd.s32 %v127, 104
    %v141 = vadd.s32 %v127, 112
    %v142 = vadd.s32 %v127, 120
    %v143 = vlaneseq
    %v144 = vshrl.u32 %v143, 7
    %v145 = vsub.s32 0, %v144
    %v146 = vrot.slane %v125, %v145
    %vm147 = vcmp.eq.s32.totalorder %v127, %v146
    %vm148 = vcmp.eq.s32.totalorder %v128, %v146
    %vm149 = vcmp.eq.s32.totalorder %v129, %v146
    %vm150 = vcmp.eq.s32.totalorder %v130, %v146
    %vm151 = vcmp.eq.s32.totalorder %v131, %v146
    %vm152 = vcmp.eq.s32.totalorder %v132, %v146
    %vm153 = vcmp.eq.s32.totalorder %v133, %v146
    %vm154 = vcmp.eq.s32.totalorder %v134, %v146
    %vm155 = vcmp.eq.s32.totalorder %v135, %v146
    %vm156 = vcmp.eq.s32.totalorder %v136, %v146
    %vm157 = vcmp.eq.s32.totalorder %v137, %v146
    %vm158 = vcmp.eq.s32.totalorder %v138, %v146
    %vm159 = vcmp.eq.s32.totalorder %v139, %v146
    %vm160 = vcmp.eq.s32.totalorder %v140, %v146
    %vm161 = vcmp.eq.s32.totalorder %v141, %v146
    %vm162 = vcmp.eq.s32.totalorder %v142, %v146
    %v163 = vsel %vm147, 1, 0
    %v164 = vsel %vm148, 1, 0
    %v165 = vsel %vm149, 1, 0
    %v166 = vsel %vm150, 1, 0
    %v167 = vsel %vm151, 1, 0
    %v168 = vsel %vm152, 1, 0
    %v169 = vsel %vm153, 1, 0
    %v170 = vsel %vm154, 1, 0
    %v171 = vsel %vm155, 1, 0
    %v172 = vsel %vm156, 1, 0
    %v173 = vsel %vm157, 1, 0
    %v174 = vsel %vm158, 1, 0
    %v175 = vsel %vm159, 1, 0
    %v176 = vsel %vm160, 1, 0
    %v177 = vsel %vm161, 1, 0
    %v178 = vsel %vm162, 1, 0
    %v179 = vcvt.s32.f32 %v163
    %v180 = vcvt.s32.f32 %v164
    %v181 = vcvt.s32.f32 %v165
    %v182 = vcvt.s32.f32 %v166
    %v183 = vcvt.s32.f32 %v167
    %v184 = vcvt.s32.f32 %v168
    %v185 = vcvt.s32.f32 %v169
    %v186 = vcvt.s32.f32 %v170
    %v187 = vcvt.s32.f32 %v171
    %v188 = vcvt.s32.f32 %v172
    %v189 = vcvt.s32.f32 %v173
    %v190 = vcvt.s32.f32 %v174
    %v191 = vcvt.s32.f32 %v175
    %v192 = vcvt.s32.f32 %v176
    %v193 = vcvt.s32.f32 %v177
    %v194 = vcvt.s32.f32 %v178
    %v195 = vpack.c.bf16 %v180, %v179
    %v196 = vpack.c.bf16 %v182, %v181
    %v197 = vpack.c.bf16 %v184, %v183
    %v198 = vpack.c.bf16 %v186, %v185
    %v199 = vpack.c.bf16 %v188, %v187
    %v200 = vpack.c.bf16 %v190, %v189
    %v201 = vpack.c.bf16 %v192, %v191
    %v202 = vpack.c.bf16 %v194, %v193
    %v203 = vld [vmem:[#allocation11] sm:$0xff]
    %v204 = vld [vmem:[#allocation11 + $0x8] sm:$0xff]
    %205 = vmatprep.subr.bf16.mxu0 0
    %206 = vmatpush1.bf16.xpose.msra.mxu0 %v195
    %207 = vmatprep.subr.bf16.mxu0 0
    %208 = vmatpush1.bf16.xpose.msra.mxu0 %v196
    %209 = vmatprep.subr.bf16.mxu0 0
    %210 = vmatpush1.bf16.xpose.msra.mxu0 %v197
    %211 = vmatprep.subr.bf16.mxu0 0
    %212 = vmatpush1.bf16.xpose.msra.mxu0 %v198
    %213 = vmatprep.subr.bf16.mxu0 0
    %214 = vmatpush1.bf16.xpose.msra.mxu0 %v199
    %215 = vmatprep.subr.bf16.mxu0 0
    %216 = vmatpush1.bf16.xpose.msra.mxu0 %v200
    %217 = vmatprep.subr.bf16.mxu0 0
    %218 = vmatpush1.bf16.xpose.msra.mxu0 %v201
    %219 = vmatprep.subr.bf16.mxu0 0
    %220 = vmatpush1.bf16.xpose.msra.mxu0 %v202
    %221 = vmatprep.subr.bf16.mxu0 0
    %222 = vmatpush1.bf16.xpose.msra.mxu0 0
    %223 = vmatprep.subr.bf16.mxu0 0
    %224 = vmatpush1.bf16.xpose.msra.mxu0 0
    %225 = vmatprep.subr.bf16.mxu0 0
    %226 = vmatpush1.bf16.xpose.msra.mxu0 0
    %227 = vmatprep.subr.bf16.mxu0 0
    %228 = vmatpush1.bf16.xpose.msra.mxu0 0
    %229 = vmatprep.subr.bf16.mxu0 0
    %230 = vmatpush1.bf16.xpose.msra.mxu0 0
    %231 = vmatprep.subr.bf16.mxu0 0
    %232 = vmatpush1.bf16.xpose.msra.mxu0 0
    %233 = vmatprep.subr.bf16.mxu0 0
    %234 = vmatpush1.bf16.xpose.msra.mxu0 0
    %235 = vmatprep.subr.bf16.mxu0 0
    %236 = vmatpush1.bf16.xpose.msra.mxu0 0
    %237 = vmatprep.mubr.bf16.mxu0 0
    %238 = vmatmul.mubr.bf16.gmra.mrb[0].mxu0 %v115
    %v239 = vpop.f32.mrb[0].mxu0
    %v240 = vadd.f32 0.0, %v239
    %v241 = vpop.f32.mrb[0].mxu0
    %v242 = vpop.f32.mrb[0].mxu0
    %v243 = vadd.f32 0.0, %v242
    %v244 = vpop.f32.mrb[0].mxu0
    %245 = vdwg.mxu0
    %v246 = vadd.f32 %v203, %v240
    %v247 = vadd.f32 %v204, %v243
    %248 = vst [vmem:[#allocation11] sm:$0xff] %v246
    %249 = vst [vmem:[#allocation11 + $0x8] sm:$0xff] %v247
    // Predicated region
    $region38: #{simple_edge_encoder.5} parent=1 // pred_check
      _
    $region39: #{simple_edge_encoder.5} parent=1 // pred_check_branch
      %251 = sbr.rel (0) target = $region41
    $region40: #{simple_edge_encoder.5} parent=1 // pred_region
      %s253 = ssub.s32 128, 128
      %254 = vsyncadd [#allocation4], %s253
      %s255 = sshll.u32 [#allocation10], 4
      %s256 = int_to_ptr.vmem [resolvable:$true] %s255
      %261 = dma.vmem_to_hbm [thread:$0]  %s256, 128, %s4, [#allocation4], 64, 64, 4
    $region41: #{simple_edge_encoder.5} parent=1 // pred_fallthru
      _
    // Predicated region
    $region42: #{simple_edge_encoder.5} parent=1 // pred_check
      _
    $region43: #{simple_edge_encoder.5} parent=1 // pred_check_branch
      %263 = sbr.rel (0) target = $region45
    $region44: #{simple_edge_encoder.5} parent=1 // pred_region
      %s265 = ssub.s32 256, 256
      %266 = vsyncadd [#allocation12], %s265
      %s267 = sshll.u32 [#allocation11], 4
      %s268 = int_to_ptr.vmem [resolvable:$true] %s267
      %273 = dma.vmem_to_hbm [thread:$0]  %s268, 256, %s5, [#allocation12], 128, 128, 8
    $region45: #{simple_edge_encoder.5} parent=1 // pred_fallthru
      _
    // Predicated region
    $region46: #{simple_edge_encoder.5} parent=1 // pred_check
      _
    $region47: #{simple_edge_encoder.5} parent=1 // pred_check_branch
      %275 = sbr.rel (0) target = $region49
    $region48: #{simple_edge_encoder.5} parent=1 // pred_region
      %276 = dma.done [#allocation4], 128
    $region49: #{simple_edge_encoder.5} parent=1 // pred_fallthru
      _
    // Predicated region
    $region50: #{simple_edge_encoder.5} parent=1 // pred_check
      _
    $region51: #{simple_edge_encoder.5} parent=1 // pred_check_branch
      %278 = sbr.rel (0) target = $region53
    $region52: #{simple_edge_encoder.5} parent=1 // pred_region
      %279 = dma.done [#allocation12], 256
    $region53: #{simple_edge_encoder.5} parent=1 // pred_fallthru
      _
    %280 = vsyncpa [#allocation3], 1
    %281 = vsyncpa [#allocation6], 1
    %282 = vsyncpa [#allocation9], 1
    %283 = vsyncpa [#allocation4], 1
    %284 = vsyncpa [#allocation12], 1

// kernel: simple_edge_encoder.4
$region0: #{simple_edge_encoder.4}
  #allocation0 [shape = 'u32[]', space=smem, size = 0x4, offset = 0x4, fixed_abs, tag = 'smem constant byte address 0x4 - core index']
  #allocation1 [shape = 'u32[144,128]{1,0:T(1,128)}', space=vmem, size = 0x12000, scoped, tag = 'internal scratch']
  #allocation2 [shape = 'f32[16,1]{1,0:T(8,128)}', space=vmem, size = 0x2000, scoped, tag = 'scratch operand']
  #allocation3 [shape = 'f32[16,1]{1,0:T(8,128)}', space=vmem, size = 0x2000, scoped, tag = 'scratch operand']
  %s0 = inlined_call_operand.hbm [shape: s32[1,128], index: 0, kind: input, shape index: {}]
  %s1 = inlined_call_operand.hbm [shape: bf16[16,128], index: 1, kind: input, shape index: {}]
  %s2 = inlined_call_operand.hbm [shape: bf16[16,128], index: 2, kind: input, shape index: {}]
  %s3 = inlined_call_operand.hbm [shape: bf16[16,16], index: 3, kind: input, shape index: {}]
  %s4 = inlined_call_operand.hbm [shape: f32[16,1], index: 4, kind: input, shape index: {}]
  %s5 = inlined_call_operand.hbm [shape: f32[16,1], index: 5, kind: input, shape index: {}]
  %s6 = inlined_call_operand.hbm [shape: f32[16,1], index: 6, kind: input, shape index: {}]
  %s7 = inlined_call_operand.hbm [shape: bf16[16,128], index: 7, kind: output, shape index: {0}]
  %s8 = inlined_call_operand.hbm [shape: f32[16,1], index: 8, kind: output, shape index: {1}]
  %s9 = inlined_call_operand.hbm [shape: f32[16,1], index: 9, kind: output, shape index: {2}]
  %10 = xla_tuple %s7, %s8, %s9
  %s11 = sld [smem:[#allocation0]]
  $region94: #{simple_edge_encoder.4} parent=0
    _
  %s13 = ssub.s32 1, %s11
  %s14 = scalar_select 0, %s13, %s11
  $region1: #{simple_edge_encoder.4} parent=0
    #allocation4 [shape = 'u8[512]{0}', space=vmem, size = 0x400, scoped, tag = 'input window, operand 0, single buffered']
    #allocation5 [shape = 's32[1]{0}', space=sflag, size = 0x4, scoped, tag = 'scoped memory for simple_edge_encoder.4']
    #allocation6 [shape = 's32[1]{0}', space=sflag, size = 0x4, scoped, tag = 'scoped memory for simple_edge_encoder.4']
    #allocation7 [shape = 'u8[4096]{0}', space=vmem, size = 0x1000, scoped, tag = 'input window, operand 1, single buffered']
    #allocation8 [shape = 's32[1]{0}', space=sflag, size = 0x4, scoped, tag = 'scoped memory for simple_edge_encoder.4']
    #allocation9 [shape = 'u8[4096]{0}', space=vmem, size = 0x1000, scoped, tag = 'input window, operand 2, single buffered']
    #allocation10 [shape = 'u8[4096]{0}', space=vmem, size = 0x1000, scoped, tag = 'input window, operand 3, single buffered']
    #allocation11 [shape = 's32[1]{0}', space=sflag, size = 0x4, scoped, tag = 'scoped memory for simple_edge_encoder.4']
    #allocation12 [shape = 'u8[8192]{0}', space=vmem, size = 0x2000, scoped, tag = 'input window, operand 4, single buffered']
    #allocation13 [shape = 'u8[8192]{0}', space=vmem, size = 0x2000, scoped, tag = 'input window, operand 5, single buffered']
    #allocation14 [shape = 's32[1]{0}', space=sflag, size = 0x4, scoped, tag = 'scoped memory for simple_edge_encoder.4']
    #allocation15 [shape = 'u8[8192]{0}', space=vmem, size = 0x2000, scoped, tag = 'input window, operand 6, single buffered']
    #allocation16 [shape = 'u8[4096]{0}', space=vmem, size = 0x1000, scoped, tag = 'output window, operand 0, single buffered']
    #allocation17 [shape = 'u8[8192]{0}', space=vmem, size = 0x2000, scoped, tag = 'output window, operand 1, single buffered']
    #allocation18 [shape = 's32[1]{0}', space=sflag, size = 0x4, scoped, tag = 'scoped memory for simple_edge_encoder.4']
    #allocation19 [shape = 'u8[8192]{0}', space=vmem, size = 0x2000, scoped, tag = 'output window, operand 2, single buffered']
    %15 = vsyncpa [#allocation5], 0
    %16 = vsyncpa [#allocation8], 0
    %17 = vsyncpa [#allocation11], 0
    %18 = vsyncpa [#allocation14], 0
    %19 = vsyncpa [#allocation6], 0
    %20 = vsyncpa [#allocation18], 0
    // Predicated region
    $region2: #{simple_edge_encoder.4} parent=1 // pred_check
      _
    $region3: #{simple_edge_encoder.4} parent=1 // pred_check_branch
      %22 = sbr.rel (0) target = $region5
    $region4: #{simple_edge_encoder.4} parent=1 // pred_region
      %s24 = ssub.s32 16, 16
      %25 = vsyncadd [#allocation5], %s24
      %s27 = sshll.u32 [#allocation4], 4
      %s28 = int_to_ptr.vmem [resolvable:$true] %s27
      %30 = dma.hbm_to_vmem [thread:$0]  %s0, 16, %s28, [#allocation5]
    $region5: #{simple_edge_encoder.4} parent=1 // pred_fallthru
      _
    // Predicated region
    $region6: #{simple_edge_encoder.4} parent=1 // pred_check
      _
    $region7: #{simple_edge_encoder.4} parent=1 // pred_check_branch
      %32 = sbr.rel (0) target = $region9
    $region8: #{simple_edge_encoder.4} parent=1 // pred_region
      %s34 = ssub.s32 128, 128
      %35 = vsyncadd [#allocation8], %s34
      %s36 = sshll.u32 [#allocation7], 4
      %s37 = int_to_ptr.vmem [resolvable:$true] %s36
      %42 = dma.hbm_to_vmem [thread:$0]  %s1, 128, %s37, [#allocation8], 64, 64, 4
    $region9: #{simple_edge_encoder.4} parent=1 // pred_fallthru
      _
    // Predicated region
    $region10: #{simple_edge_encoder.4} parent=1 // pred_check
      _
    $region11: #{simple_edge_encoder.4} parent=1 // pred_check_branch
      %44 = sbr.rel (0) target = $region13
    $region12: #{simple_edge_encoder.4} parent=1 // pred_region
      %s46 = ssub.s32 128, 128
      %47 = vsyncadd [#allocation8], %s46
      %s48 = sshll.u32 [#allocation9], 4
      %s49 = int_to_ptr.vmem [resolvable:$true] %s48
      %54 = dma.hbm_to_vmem [thread:$0]  %s2, 128, %s49, [#allocation8], 64, 64, 4
    $region13: #{simple_edge_encoder.4} parent=1 // pred_fallthru
      _
    // Predicated region
    $region14: #{simple_edge_encoder.4} parent=1 // pred_check
      _
    $region15: #{simple_edge_encoder.4} parent=1 // pred_check_branch
      %56 = sbr.rel (0) target = $region17
    $region16: #{simple_edge_encoder.4} parent=1 // pred_region
      %s58 = ssub.s32 128, 128
      %59 = vsyncadd [#allocation11], %s58
      %s60 = sshll.u32 [#allocation10], 4
      %s61 = int_to_ptr.vmem [resolvable:$true] %s60
      %66 = dma.hbm_to_vmem [thread:$0]  %s3, 128, %s61, [#allocation11], 64, 64, 4
    $region17: #{simple_edge_encoder.4} parent=1 // pred_fallthru
      _
    // Predicated region
    $region18: #{simple_edge_encoder.4} parent=1 // pred_check
      _
    $region19: #{simple_edge_encoder.4} parent=1 // pred_check_branch
      %68 = sbr.rel (0) target = $region21
    $region20: #{simple_edge_encoder.4} parent=1 // pred_region
      %s70 = ssub.s32 256, 256
      %71 = vsyncadd [#allocation11], %s70
      %s72 = sshll.u32 [#allocation12], 4
      %s73 = int_to_ptr.vmem [resolvable:$true] %s72
      %78 = dma.hbm_to_vmem [thread:$0]  %s4, 256, %s73, [#allocation11], 128, 128, 8
    $region21: #{simple_edge_encoder.4} parent=1 // pred_fallthru
      _
    // Predicated region
    $region22: #{simple_edge_encoder.4} parent=1 // pred_check
      _
    $region23: #{simple_edge_encoder.4} parent=1 // pred_check_branch
      %80 = sbr.rel (0) target = $region25
    $region24: #{simple_edge_encoder.4} parent=1 // pred_region
      %s82 = ssub.s32 256, 256
      %83 = vsyncadd [#allocation14], %s82
      %s84 = sshll.u32 [#allocation13], 4
      %s85 = int_to_ptr.vmem [resolvable:$true] %s84
      %90 = dma.hbm_to_vmem [thread:$0]  %s5, 256, %s85, [#allocation14], 128, 128, 8
    $region25: #{simple_edge_encoder.4} parent=1 // pred_fallthru
      _
    // Predicated region
    $region26: #{simple_edge_encoder.4} parent=1 // pred_check
      _
    $region27: #{simple_edge_encoder.4} parent=1 // pred_check_branch
      %92 = sbr.rel (0) target = $region29
    $region28: #{simple_edge_encoder.4} parent=1 // pred_region
      %s94 = ssub.s32 256, 256
      %95 = vsyncadd [#allocation14], %s94
      %s96 = sshll.u32 [#allocation15], 4
      %s97 = int_to_ptr.vmem [resolvable:$true] %s96
      %102 = dma.hbm_to_vmem [thread:$0]  %s6, 256, %s97, [#allocation14], 128, 128, 8
    $region29: #{simple_edge_encoder.4} parent=1 // pred_fallthru
      _
    // Predicated region
    $region30: #{simple_edge_encoder.4} parent=1 // pred_check
      _
    $region31: #{simple_edge_encoder.4} parent=1 // pred_check_branch
      %104 = sbr.rel (0) target = $region33
    $region32: #{simple_edge_encoder.4} parent=1 // pred_region
      %105 = dma.done [#allocation5], 16
    $region33: #{simple_edge_encoder.4} parent=1 // pred_fallthru
      _
    // Predicated region
    $region34: #{simple_edge_encoder.4} parent=1 // pred_check
      _
    $region35: #{simple_edge_encoder.4} parent=1 // pred_check_branch
      %107 = sbr.rel (0) target = $region37
    $region36: #{simple_edge_encoder.4} parent=1 // pred_region
      %108 = dma.done [#allocation8], 128
    $region37: #{simple_edge_encoder.4} parent=1 // pred_fallthru
      _
    // Predicated region
    $region38: #{simple_edge_encoder.4} parent=1 // pred_check
      _
    $region39: #{simple_edge_encoder.4} parent=1 // pred_check_branch
      %110 = sbr.rel (0) target = $region41
    $region40: #{simple_edge_encoder.4} parent=1 // pred_region
      %111 = dma.done [#allocation8], 128
    $region41: #{simple_edge_encoder.4} parent=1 // pred_fallthru
      _
    // Predicated region
    $region42: #{simple_edge_encoder.4} parent=1 // pred_check
      _
    $region43: #{simple_edge_encoder.4} parent=1 // pred_check_branch
      %113 = sbr.rel (0) target = $region45
    $region44: #{simple_edge_encoder.4} parent=1 // pred_region
      %114 = dma.done [#allocation11], 128
    $region45: #{simple_edge_encoder.4} parent=1 // pred_fallthru
      _
    // Predicated region
    $region46: #{simple_edge_encoder.4} parent=1 // pred_check
      _
    $region47: #{simple_edge_encoder.4} parent=1 // pred_check_branch
      %116 = sbr.rel (0) target = $region49
    $region48: #{simple_edge_encoder.4} parent=1 // pred_region
      %117 = dma.done [#allocation11], 256
    $region49: #{simple_edge_encoder.4} parent=1 // pred_fallthru
      _
    // Predicated region
    $region50: #{simple_edge_encoder.4} parent=1 // pred_check
      _
    $region51: #{simple_edge_encoder.4} parent=1 // pred_check_branch
      %119 = sbr.rel (0) target = $region53
    $region52: #{simple_edge_encoder.4} parent=1 // pred_region
      %120 = dma.done [#allocation14], 256
    $region53: #{simple_edge_encoder.4} parent=1 // pred_fallthru
      _
    // Predicated region
    $region54: #{simple_edge_encoder.4} parent=1 // pred_check
      _
    $region55: #{simple_edge_encoder.4} parent=1 // pred_check_branch
      %122 = sbr.rel (0) target = $region57
    $region56: #{simple_edge_encoder.4} parent=1 // pred_region
      %123 = dma.done [#allocation14], 256
    $region57: #{simple_edge_encoder.4} parent=1 // pred_fallthru
      _
    %p125 = scmp.eq.s32.totalorder 0, 0
    // Predicated region
    $region58: #{simple_edge_encoder.4} parent=1 // pred_check
      %p126 = pneg %p125
    $region59: #{simple_edge_encoder.4} parent=1 // pred_check_branch
      %128 = sbr.rel (%p126) target = $region61
    $region60: #{simple_edge_encoder.4} parent=1 // pred_region
      %vm129 = vcmask 7168
      %130 = vst.msk [vmem:[#allocation2] sm:$0xff] %vm129, 0.0
      %131 = vst.msk [vmem:[#allocation2 + $0x8] sm:$0xff] %vm129, 0.0
      %132 = vst.msk [vmem:[#allocation3] sm:$0xff] %vm129, 0.0
      %133 = vst.msk [vmem:[#allocation3 + $0x8] sm:$0xff] %vm129, 0.0
    $region61: #{simple_edge_encoder.4} parent=1 // pred_fallthru
      _
    %v134 = vld [vmem:[#allocation4] sm:$0x1]
    %v135 = vlaneseq
    %v136 = vshrl.u32 %v135, 7
    %v137 = vadd.s32 %v136, 8
    %v138 = vadd.s32 %v136, 16
    %v139 = vadd.s32 %v136, 24
    %v140 = vadd.s32 %v136, 32
    %v141 = vadd.s32 %v136, 40
    %v142 = vadd.s32 %v136, 48
    %v143 = vadd.s32 %v136, 56
    %v144 = vadd.s32 %v136, 64
    %v145 = vadd.s32 %v136, 72
    %v146 = vadd.s32 %v136, 80
    %v147 = vadd.s32 %v136, 88
    %v148 = vadd.s32 %v136, 96
    %v149 = vadd.s32 %v136, 104
    %v150 = vadd.s32 %v136, 112
    %v151 = vadd.s32 %v136, 120
    %v152 = vlaneseq
    %v153 = vshrl.u32 %v152, 7
    %v154 = vsub.s32 0, %v153
    %v155 = vrot.slane %v134, %v154
    %vm156 = vcmp.eq.s32.totalorder %v136, %v155
    %vm157 = vcmp.eq.s32.totalorder %v137, %v155
    %vm158 = vcmp.eq.s32.totalorder %v138, %v155
    %vm159 = vcmp.eq.s32.totalorder %v139, %v155
    %vm160 = vcmp.eq.s32.totalorder %v140, %v155
    %vm161 = vcmp.eq.s32.totalorder %v141, %v155
    %vm162 = vcmp.eq.s32.totalorder %v142, %v155
    %vm163 = vcmp.eq.s32.totalorder %v143, %v155
    %vm164 = vcmp.eq.s32.totalorder %v144, %v155
    %vm165 = vcmp.eq.s32.totalorder %v145, %v155
    %vm166 = vcmp.eq.s32.totalorder %v146, %v155
    %vm167 = vcmp.eq.s32.totalorder %v147, %v155
    %vm168 = vcmp.eq.s32.totalorder %v148, %v155
    %vm169 = vcmp.eq.s32.totalorder %v149, %v155
    %vm170 = vcmp.eq.s32.totalorder %v150, %v155
    %vm171 = vcmp.eq.s32.totalorder %v151, %v155
    %v172 = vsel %vm156, 1, 0
    %v173 = vsel %vm157, 1, 0
    %v174 = vsel %vm158, 1, 0
    %v175 = vsel %vm159, 1, 0
    %v176 = vsel %vm160, 1, 0
    %v177 = vsel %vm161, 1, 0
    %v178 = vsel %vm162, 1, 0
    %v179 = vsel %vm163, 1, 0
    %v180 = vsel %vm164, 1, 0
    %v181 = vsel %vm165, 1, 0
    %v182 = vsel %vm166, 1, 0
    %v183 = vsel %vm167, 1, 0
    %v184 = vsel %vm168, 1, 0
    %v185 = vsel %vm169, 1, 0
    %v186 = vsel %vm170, 1, 0
    %v187 = vsel %vm171, 1, 0
    %v188 = vcvt.s32.f32 %v172
    %v189 = vcvt.s32.f32 %v173
    %v190 = vcvt.s32.f32 %v174
    %v191 = vcvt.s32.f32 %v175
    %v192 = vcvt.s32.f32 %v176
    %v193 = vcvt.s32.f32 %v177
    %v194 = vcvt.s32.f32 %v178
    %v195 = vcvt.s32.f32 %v179
    %v196 = vcvt.s32.f32 %v180
    %v197 = vcvt.s32.f32 %v181
    %v198 = vcvt.s32.f32 %v182
    %v199 = vcvt.s32.f32 %v183
    %v200 = vcvt.s32.f32 %v184
    %v201 = vcvt.s32.f32 %v185
    %v202 = vcvt.s32.f32 %v186
    %v203 = vcvt.s32.f32 %v187
    %v204 = vpack.c.bf16 %v189, %v188
    %v205 = vpack.c.bf16 %v191, %v190
    %v206 = vpack.c.bf16 %v193, %v192
    %v207 = vpack.c.bf16 %v195, %v194
    %v208 = vpack.c.bf16 %v197, %v196
    %v209 = vpack.c.bf16 %v199, %v198
    %v210 = vpack.c.bf16 %v201, %v200
    %v211 = vpack.c.bf16 %v203, %v202
    %v212 = vld [vmem:[#allocation9] sm:$0xf]
    %v213 = vld [vmem:[#allocation9 + $0x4] sm:$0xf]
    %v214 = vld [vmem:[#allocation10] sm:$0xf]
    %v215 = vld [vmem:[#allocation10 + $0x4] sm:$0xf]
    %v216 = vld [vmem:[#allocation7] sm:$0xf]
    %v217 = vld [vmem:[#allocation7 + $0x4] sm:$0xf]
    %v220 = vunpack.c.l.b16 %v214
    %v221 = vunpack.c.l.b16 %v215
    %v222 = vpack.c.b16 %v221, %v220
    %v225 = vunpack.c.l.b16 %v216
    %v226 = vunpack.c.l.b16 %v217
    %v227 = vpack.c.b16 %v226, %v225
    %vm229 = vcmask 130048
    %v231 = vsel %vm229, %v222, 0
    %233 = vmatprep.subr.bf16.mxu0 0
    %234 = vmatpush1.bf16.msra.mxu0 %v227
    %235 = vmatprep.subr.bf16.mxu0 0
    %236 = vmatpush1.bf16.msra.mxu0 0
    %237 = vmatprep.subr.bf16.mxu0 0
    %238 = vmatpush1.bf16.msra.mxu0 0
    %239 = vmatprep.subr.bf16.mxu0 0
    %240 = vmatpush1.bf16.msra.mxu0 0
    %241 = vmatprep.subr.bf16.mxu0 0
    %242 = vmatpush1.bf16.msra.mxu0 0
    %243 = vmatprep.subr.bf16.mxu0 0
    %244 = vmatpush1.bf16.msra.mxu0 0
    %245 = vmatprep.subr.bf16.mxu0 0
    %246 = vmatpush1.bf16.msra.mxu0 0
    %247 = vmatprep.subr.bf16.mxu0 0
    %248 = vmatpush1.bf16.msra.mxu0 0
    %249 = vmatprep.subr.bf16.mxu0 0
    %250 = vmatpush1.bf16.msra.mxu0 0
    %251 = vmatprep.subr.bf16.mxu0 0
    %252 = vmatpush1.bf16.msra.mxu0 0
    %253 = vmatprep.subr.bf16.mxu0 0
    %254 = vmatpush1.bf16.msra.mxu0 0
    %255 = vmatprep.subr.bf16.mxu0 0
    %256 = vmatpush1.bf16.msra.mxu0 0
    %257 = vmatprep.subr.bf16.mxu0 0
    %258 = vmatpush1.bf16.msra.mxu0 0
    %259 = vmatprep.subr.bf16.mxu0 0
    %260 = vmatpush1.bf16.msra.mxu0 0
    %261 = vmatprep.subr.bf16.mxu0 0
    %262 = vmatpush1.bf16.msra.mxu0 0
    %263 = vmatprep.subr.bf16.mxu0 0
    %264 = vmatpush1.bf16.msra.mxu0 0
    %265 = vmatprep.mubr.bf16.mxu0 0
    %266 = vmatmul.mubr.bf16.gmra.mrb[0].mxu0 %v231
    %v267 = vpop.f32.mrb[0].mxu0
    %v268 = vadd.f32 0.0, %v267
    %v269 = vpop.f32.mrb[0].mxu0
    %v270 = vpop.f32.mrb[0].mxu0
    %v271 = vadd.f32 0.0, %v270
    %v272 = vpop.f32.mrb[0].mxu0
    %273 = vdwg.mxu0
    %v276 = vunpack.c.l.b16 %v212
    %v277 = vunpack.c.l.b16 %v213
    %v278 = vpack.c.b16 %v277, %v276
    %280 = vmatprep.subr.bf16.mxu0 0
    %281 = vmatpush1.bf16.msra.mxu0 %v204
    %282 = vmatprep.subr.bf16.mxu0 0
    %283 = vmatpush1.bf16.msra.mxu0 %v205
    %284 = vmatprep.subr.bf16.mxu0 0
    %285 = vmatpush1.bf16.msra.mxu0 %v206
    %286 = vmatprep.subr.bf16.mxu0 0
    %287 = vmatpush1.bf16.msra.mxu0 %v207
    %288 = vmatprep.subr.bf16.mxu0 0
    %289 = vmatpush1.bf16.msra.mxu0 %v208
    %290 = vmatprep.subr.bf16.mxu0 0
    %291 = vmatpush1.bf16.msra.mxu0 %v209
    %292 = vmatprep.subr.bf16.mxu0 0
    %293 = vmatpush1.bf16.msra.mxu0 %v210
    %294 = vmatprep.subr.bf16.mxu0 0
    %295 = vmatpush1.bf16.msra.mxu0 %v211
    %296 = vmatprep.subr.bf16.mxu0 0
    %297 = vmatpush1.bf16.msra.mxu0 0
    %298 = vmatprep.subr.bf16.mxu0 0
    %299 = vmatpush1.bf16.msra.mxu0 0
    %300 = vmatprep.subr.bf16.mxu0 0
    %301 = vmatpush1.bf16.msra.mxu0 0
    %302 = vmatprep.subr.bf16.mxu0 0
    %303 = vmatpush1.bf16.msra.mxu0 0
    %304 = vmatprep.subr.bf16.mxu0 0
    %305 = vmatpush1.bf16.msra.mxu0 0
    %306 = vmatprep.subr.bf16.mxu0 0
    %307 = vmatpush1.bf16.msra.mxu0 0
    %308 = vmatprep.subr.bf16.mxu0 0
    %309 = vmatpush1.bf16.msra.mxu0 0
    %310 = vmatprep.subr.bf16.mxu0 0
    %311 = vmatpush1.bf16.msra.mxu0 0
    %312 = vmatprep.mubr.bf16.mxu0 0
    %313 = vmatmul.mubr.bf16.gmra.mrb[0].mxu0 %v278
    %v314 = vpop.f32.mrb[0].mxu0
    %v315 = vadd.f32 %v268, %v314
    %v316 = vpop.f32.mrb[0].mxu0
    %v317 = vpop.f32.mrb[0].mxu0
    %v318 = vadd.f32 %v271, %v317
    %v319 = vpop.f32.mrb[0].mxu0
    %320 = vdwg.mxu0
    %v321 = vld [vmem:[#allocation12] sm:$0xff]
    %v322 = vld [vmem:[#allocation12 + $0x8] sm:$0xff]
    %324 = vset.pattern.permute.xlu0 0
    %325 = vperm.xlu0 %324, %v321
    %v326 = vpop.permute.xlu0 %325
    %329 = vset.pattern.permute.xlu0 0
    %330 = vperm.xlu0 %329, %v322
    %v331 = vpop.permute.xlu0 %330
    %v333 = vadd.f32 %v315, %v326
    %v334 = vadd.f32 %v318, %v331
    %v335 = vpack.c.bf16 %v334, %v333
    %v337 = vunpack.c.l.b16 %v335
    %v338 = vunpack.c.h.b16 %v335
    %v339 = vpack.c.b16 %v337, %v337
    %v340 = vpack.c.b16 %v338, %v338
    %343 = vst [vmem:[#allocation16] sm:$0xf] %v339
    %344 = vst [vmem:[#allocation16 + $0x4] sm:$0xf] %v340
    %p345 = scmp.ne.s32.totalorder 0, 0
    // Predicated region
    $region62: #{simple_edge_encoder.4} parent=1 // pred_check
      %p346 = pneg %p345
    $region63: #{simple_edge_encoder.4} parent=1 // pred_check_branch
      %348 = sbr.rel (%p346) target = $region65
    $region64: #{simple_edge_encoder.4} parent=1 // pred_region
      %v349 = vld [vmem:[#allocation2] sm:$0xff]
      %v350 = vld [vmem:[#allocation2 + $0x8] sm:$0xff]
      %351 = vadd.xlane.f32.xlu0 %v333
      %v352 = vpop.xlane.xlu0 %351
      %353 = vadd.xlane.f32.xlu0 %v334
      %v354 = vpop.xlane.xlu0 %353
      %v355 = vadd.f32 %v349, %v352
      %v356 = vadd.f32 %v350, %v354
      %vm357 = vcmask 7168
      %358 = vst.msk [vmem:[#allocation2] sm:$0xff] %vm357, %v355
      %359 = vst.msk [vmem:[#allocation2 + $0x8] sm:$0xff] %vm357, %v356
      %v360 = vld [vmem:[#allocation3] sm:$0xff]
      %v361 = vld [vmem:[#allocation3 + $0x8] sm:$0xff]
      %v362 = vmul.f32 %v333, %v333
      %v363 = vmul.f32 %v334, %v334
      %364 = vadd.xlane.f32.xlu0 %v362
      %v365 = vpop.xlane.xlu0 %364
      %366 = vadd.xlane.f32.xlu0 %v363
      %v367 = vpop.xlane.xlu0 %366
      %v368 = vadd.f32 %v360, %v365
      %v369 = vadd.f32 %v361, %v367
      %370 = vst.msk [vmem:[#allocation3] sm:$0xff] %vm357, %v368
      %371 = vst.msk [vmem:[#allocation3 + $0x8] sm:$0xff] %vm357, %v369
    $region65: #{simple_edge_encoder.4} parent=1 // pred_fallthru
      _
    // Predicated region
    $region66: #{simple_edge_encoder.4} parent=1 // pred_check
      %p372 = pneg %p125
    $region67: #{simple_edge_encoder.4} parent=1 // pred_check_branch
      %374 = sbr.rel (%p372) target = $region69
    $region68: #{simple_edge_encoder.4} parent=1 // pred_region
      %v375 = vlaneseq
      %v376 = vand.u32 %v375, 127
      %vm377 = vcmp.lt.s32.totalorder %v376, 16
      %v378 = vsel %vm377, 1, 0
      %v379 = vcvt.s32.f32 %v378
      %v380 = vld [vmem:[#allocation2] sm:$0xff]
      %v381 = vld [vmem:[#allocation2 + $0x8] sm:$0xff]
      %v382 = vmul.f32 %v333, %v379
      %v383 = vmul.f32 %v334, %v379
      %384 = vadd.xlane.f32.xlu0 %v382
      %v385 = vpop.xlane.xlu0 %384
      %386 = vadd.xlane.f32.xlu0 %v383
      %v387 = vpop.xlane.xlu0 %386
      %v388 = vadd.f32 %v380, %v385
      %v389 = vadd.f32 %v381, %v387
      %vm390 = vcmask 7168
      %391 = vst.msk [vmem:[#allocation2] sm:$0xff] %vm390, %v388
      %392 = vst.msk [vmem:[#allocation2 + $0x8] sm:$0xff] %vm390, %v389
      %v393 = vld [vmem:[#allocation3] sm:$0xff]
      %v394 = vld [vmem:[#allocation3 + $0x8] sm:$0xff]
      %v395 = vmul.f32 %v333, %v333
      %v396 = vmul.f32 %v334, %v334
      %v397 = vmul.f32 %v395, %v379
      %v398 = vmul.f32 %v396, %v379
      %399 = vadd.xlane.f32.xlu0 %v397
      %v400 = vpop.xlane.xlu0 %399
      %401 = vadd.xlane.f32.xlu0 %v398
      %v402 = vpop.xlane.xlu0 %401
      %v403 = vadd.f32 %v393, %v400
      %v404 = vadd.f32 %v394, %v402
      %405 = vst.msk [vmem:[#allocation3] sm:$0xff] %vm390, %v403
      %406 = vst.msk [vmem:[#allocation3 + $0x8] sm:$0xff] %vm390, %v404
      %v407 = vld [vmem:[#allocation2] sm:$0xff]
      %v408 = vld [vmem:[#allocation2 + $0x8] sm:$0xff]
      %v409 = vmul.f32 %v407, 0.0625
      %v410 = vmul.f32 %v408, 0.0625
      %v411 = vld [vmem:[#allocation3] sm:$0xff]
      %v412 = vld [vmem:[#allocation3 + $0x8] sm:$0xff]
      %v413 = vmul.f32 %v411, 0.0625
      %v414 = vmul.f32 %v412, 0.0625
      %v415 = vmul.f32 %v409, %v409
      %v416 = vmul.f32 %v410, %v410
      %v417 = vsub.f32 %v413, %v415
      %v418 = vsub.f32 %v414, %v416
      %v419 = vmax.f32 %v417, 0.0
      %v420 = vmax.f32 %v418, 0.0
      %v421 = vld [vmem:[#allocation13] sm:$0xff]
      %v422 = vld [vmem:[#allocation13 + $0x8] sm:$0xff]
      %v423 = vadd.f32 %v419, 1e-05
      %v424 = vadd.f32 %v420, 1e-05
      %v425 = vrsqrt.pop %v423
      %v426 = vrsqrt.pop %v424
      %v427 = vmul.f32 %v421, %v425
      %v428 = vmul.f32 %v422, %v426
      %429 = vst.msk [vmem:[#allocation17] sm:$0xff] %vm390, %v427
      %430 = vst.msk [vmem:[#allocation17 + $0x8] sm:$0xff] %vm390, %v428
      %v431 = vld [vmem:[#allocation15] sm:$0xff]
      %v432 = vld [vmem:[#allocation15 + $0x8] sm:$0xff]
      %v433 = vmul.f32 %v409, %v427
      %v434 = vmul.f32 %v410, %v428
      %v435 = vsub.f32 %v431, %v433
      %v436 = vsub.f32 %v432, %v434
      %437 = vst.msk [vmem:[#allocation19] sm:$0xff] %vm390, %v435
      %438 = vst.msk [vmem:[#allocation19 + $0x8] sm:$0xff] %vm390, %v436
    $region69: #{simple_edge_encoder.4} parent=1 // pred_fallthru
      _
    // Predicated region
    $region70: #{simple_edge_encoder.4} parent=1 // pred_check
      _
    $region71: #{simple_edge_encoder.4} parent=1 // pred_check_branch
      %440 = sbr.rel (0) target = $region73
    $region72: #{simple_edge_encoder.4} parent=1 // pred_region
      %s442 = ssub.s32 128, 128
      %443 = vsyncadd [#allocation6], %s442
      %s444 = sshll.u32 [#allocation16], 4
      %s445 = int_to_ptr.vmem [resolvable:$true] %s444
      %450 = dma.vmem_to_hbm [thread:$0]  %s445, 128, %s7, [#allocation6], 64, 64, 4
    $region73: #{simple_edge_encoder.4} parent=1 // pred_fallthru
      _
    // Predicated region
    $region74: #{simple_edge_encoder.4} parent=1 // pred_check
      _
    $region75: #{simple_edge_encoder.4} parent=1 // pred_check_branch
      %452 = sbr.rel (0) target = $region77
    $region76: #{simple_edge_encoder.4} parent=1 // pred_region
      %s454 = ssub.s32 256, 256
      %455 = vsyncadd [#allocation18], %s454
      %s456 = sshll.u32 [#allocation17], 4
      %s457 = int_to_ptr.vmem [resolvable:$true] %s456
      %462 = dma.vmem_to_hbm [thread:$0]  %s457, 256, %s8, [#allocation18], 128, 128, 8
    $region77: #{simple_edge_encoder.4} parent=1 // pred_fallthru
      _
    // Predicated region
    $region78: #{simple_edge_encoder.4} parent=1 // pred_check
      _
    $region79: #{simple_edge_encoder.4} parent=1 // pred_check_branch
      %464 = sbr.rel (0) target = $region81
    $region80: #{simple_edge_encoder.4} parent=1 // pred_region
      %s466 = ssub.s32 256, 256
      %467 = vsyncadd [#allocation18], %s466
      %s468 = sshll.u32 [#allocation19], 4
      %s469 = int_to_ptr.vmem [resolvable:$true] %s468
      %474 = dma.vmem_to_hbm [thread:$0]  %s469, 256, %s9, [#allocation18], 128, 128, 8
    $region81: #{simple_edge_encoder.4} parent=1 // pred_fallthru
      _
    // Predicated region
    $region82: #{simple_edge_encoder.4} parent=1 // pred_check
      _
    $region83: #{simple_edge_encoder.4} parent=1 // pred_check_branch
      %476 = sbr.rel (0) target = $region85
    $region84: #{simple_edge_encoder.4} parent=1 // pred_region
      %477 = dma.done [#allocation6], 128
    $region85: #{simple_edge_encoder.4} parent=1 // pred_fallthru
      _
    // Predicated region
    $region86: #{simple_edge_encoder.4} parent=1 // pred_check
      _
    $region87: #{simple_edge_encoder.4} parent=1 // pred_check_branch
      %479 = sbr.rel (0) target = $region89
    $region88: #{simple_edge_encoder.4} parent=1 // pred_region
      %480 = dma.done [#allocation18], 256
    $region89: #{simple_edge_encoder.4} parent=1 // pred_fallthru
      _
    // Predicated region
    $region90: #{simple_edge_encoder.4} parent=1 // pred_check
      _
    $region91: #{simple_edge_encoder.4} parent=1 // pred_check_branch
      %482 = sbr.rel (0) target = $region93
    $region92: #{simple_edge_encoder.4} parent=1 // pred_region
      %483 = dma.done [#allocation18], 256
    $region93: #{simple_edge_encoder.4} parent=1 // pred_fallthru
      _
    %484 = vsyncpa [#allocation5], 1
    %485 = vsyncpa [#allocation8], 1
    %486 = vsyncpa [#allocation11], 1
    %487 = vsyncpa [#allocation14], 1
    %488 = vsyncpa [#allocation6], 1
    %489 = vsyncpa [#allocation18], 1

</llo_original>
